<compile_context>
chip_gen: v7x
topology: tpu7x:2x2x1
jax: 0.10.0
libtpu: 0.0.40
codegen_flags: <defaults>
</compile_context>

<pallas_src>
import functools

import jax
import jax.numpy as jnp
from jax.experimental import pallas as pl
from jax.experimental.pallas import tpu as pltpu


def actor_kernel(x_ref, wih_ref, b_ref, whh_ref, wfc_ref, bfc_ref,
                 out_ref, w_ref, *, T, B, H):
    # ------------------------------------------------------------------
    # Hoisted input projection (both directions, all timesteps) with bf16
    # MXU operands, f32 accumulation.  pre[b] is (T, 8H): columns [0:4H] are
    # the forward-direction pre-gates at time t, [4H:8H] the backward-
    # direction pre-gates at time t (combined bias b_ih + b_hh folded in).
    # ------------------------------------------------------------------
    wih16 = wih_ref[...].astype(jnp.bfloat16)                    # (D, 8H)
    bias = b_ref[...]                                            # (1, 8H) f32
    pre = [jnp.dot(x_ref[b].astype(jnp.bfloat16), wih16,
                   preferred_element_type=jnp.float32) + bias
           for b in range(B)]                                    # B x (T, 8H)

    # Pre-flip the backward half along T once (static): rows[s] is one
    # contiguous (B, 8H) block = [fwd pre-gates @ t=s | bwd pre-gates @ t=T-1-s].
    rows = [
        jnp.concatenate(
            [jnp.concatenate([pre[b][s:s + 1, 0:4 * H],
                              pre[b][T - 1 - s:T - s, 4 * H:8 * H]], axis=-1)
             for b in range(B)], axis=0)
        for s in range(T)
    ]

    # ------------------------------------------------------------------
    # Fused, fully unrolled fwd/bwd recurrence: one merged (B, 2H) @ (2H, 8H)
    # block-diagonal matmul per step (bf16 operands, f32 accumulate), two
    # full-width activation passes, all per-step hiddens kept in registers.
    # ------------------------------------------------------------------
    whh16 = whh_ref[...].astype(jnp.bfloat16)                    # (2H, 8H)
    c_f = jnp.zeros((B, H), jnp.float32)
    c_b = jnp.zeros((B, H), jnp.float32)
    h_cat = jnp.zeros((B, 2 * H), jnp.float32)                   # h0 == 0
    h_fwd = [None] * T
    h_bwd = [None] * T

    for s in range(T):
        if s == 0:
            g = rows[0]                       # h == 0: skip the first matmul
        else:
            g = rows[s] + jnp.dot(h_cat.astype(jnp.bfloat16), whh16,
                                  preferred_element_type=jnp.float32)  # (B,8H)
        sg = jax.nn.sigmoid(g)                # full-width: i/f/o of both dirs
        tg = jnp.tanh(g)                      # full-width: g   of both dirs
        # PyTorch gate order per direction: i, f, g, o.
        c_f = sg[:, H:2 * H] * c_f + sg[:, 0:H] * tg[:, 2 * H:3 * H]
        h_f = sg[:, 3 * H:4 * H] * jnp.tanh(c_f)
        c_b = sg[:, 5 * H:6 * H] * c_b + sg[:, 4 * H:5 * H] * tg[:, 6 * H:7 * H]
        h_b = sg[:, 7 * H:8 * H] * jnp.tanh(c_b)
        h_cat = jnp.concatenate([h_f, h_b], axis=-1)   # feeds the next step
        h_fwd[s] = h_f                       # forward chain emits time s
        h_bwd[T - 1 - s] = h_b               # backward chain emits time T-1-s

    # (B, T, 2H) bi-directional hidden states, assembled once from registers.
    hid = jnp.stack(
        [jnp.concatenate([h_fwd[t], h_bwd[t]], axis=-1) for t in range(T)],
        axis=1)                                                  # (B, T, 2H)

    # ------------------------------------------------------------------
    # Scaled dot-product self-attention, batched over B:
    # w = softmax(hid hid^T / sqrt(2H)); only the last query row feeds the FC.
    # Exact reciprocal for the softmax: w is a user-visible output.
    # ------------------------------------------------------------------
    scale = 1.0 / float(2 * H) ** 0.5
    q = hid * scale                                   # fold scale into queries
    scores = jnp.einsum("btd,bsd->bts", q, hid,
                        preferred_element_type=jnp.float32)      # (B, T, T)
    m = jnp.max(scores, axis=-1, keepdims=True)
    e = jnp.exp(scores - m)
    w = e / jnp.sum(e, axis=-1, keepdims=True)
    w_ref[...] = w                                               # single store

    # Last-row context, batched over B in a single dot_general.
    # TODO(synk): a VPU broadcast-multiply + sublane reduce would avoid this
    # tiny MXU round trip, but needs a row->column relayout; not worth it here.
    ctx_last = jnp.einsum("bqs,bsd->bqd", w[:, T - 1:T, :], hid,
                          preferred_element_type=jnp.float32)[:, 0, :]  # (B,2H)

    out_ref[...] = (jnp.dot(ctx_last, wfc_ref[...],
                            preferred_element_type=jnp.float32) + bfc_ref[...])


def prepare_actor_params(params):
    """One-time packing into the fused layouts the kernel consumes.

    Do this at init / checkpoint-load time, NOT per forward call.  Note the
    layout contract: b_f/b_b are the combined b_ih + b_hh and all weights are
    stored transposed as (in_features, out_features); a PyTorch state_dict
    import must reproduce exactly this combined/transposed layout.
    """
    H = params["whh_f"].shape[0]
    wih = jnp.concatenate([params["wih_f"], params["wih_b"]], axis=1)   # (D, 8H)
    b = jnp.concatenate([params["b_f"], params["b_b"]], axis=1)         # (1, 8H)
    z = jnp.zeros((H, 4 * H), jnp.float32)
    whh = jnp.concatenate(
        [jnp.concatenate([params["whh_f"], z], axis=1),
         jnp.concatenate([z, params["whh_b"]], axis=1)], axis=0)        # (2H, 8H)
    return dict(wih=wih, b=b, whh=whh, wfc=params["wfc"], bfc=params["bfc"])


def actor_forward(state, packed):
    """state: (B, T, D) float32 (batch_first, like the PyTorch module)."""
    B, T, _ = state.shape
    H = packed["whh"].shape[0] // 2

    kernel = pl.pallas_call(
        functools.partial(actor_kernel, T=T, B=B, H=H),
        out_shape=(jax.ShapeDtypeStruct((B, 6), jnp.float32),
                   jax.ShapeDtypeStruct((B, T, T), jnp.float32)),
        in_specs=[pl.BlockSpec(memory_space=pltpu.MemorySpace.VMEM)] * 6,
        out_specs=(pl.BlockSpec(memory_space=pltpu.MemorySpace.VMEM),
                   pl.BlockSpec(memory_space=pltpu.MemorySpace.VMEM)),
    )
    return kernel(state, packed["wih"], packed["b"], packed["whh"],
                  packed["wfc"], packed["bfc"])


def init_params(key, num_inputs, hidden_size):
    """Deterministic init mimicking PyTorch's U(-1/sqrt(H), 1/sqrt(H))."""
    H = hidden_size
    k_lstm = 1.0 / float(H) ** 0.5
    k_fc = 1.0 / float(2 * H) ** 0.5
    ks = jax.random.split(key, 8)

    def u(k, shape, bound):
        return jax.random.uniform(k, shape, jnp.float32, -bound, bound)

    return dict(
        # forward-direction LSTM (weights stored transposed: (in, 4H), (H, 4H))
        wih_f=u(ks[0], (num_inputs, 4 * H), k_lstm),
        whh_f=u(ks[1], (H, 4 * H), k_lstm),
        b_f=u(ks[2], (1, 4 * H), k_lstm),     # combined b_ih + b_hh
        # reverse-direction LSTM
        wih_b=u(ks[3], (num_inputs, 4 * H), k_lstm),
        whh_b=u(ks[4], (H, 4 * H), k_lstm),
        b_b=u(ks[5], (1, 4 * H), k_lstm),
        # fc: Linear(2H, 6), stored transposed as (2H, 6)
        wfc=u(ks[6], (2 * H, 6), k_fc),
        bfc=u(ks[7], (1, 6), k_fc),
    )


def reference_forward(state, params):
    """Pure-JAX f32 reference mirroring the PyTorch forward semantics."""
    B, T, D = state.shape
    H = params["whh_f"].shape[0]

    def run_dir(wih, whh, b, reverse):
        h = jnp.zeros((B, H), jnp.float32)
        c = jnp.zeros((B, H), jnp.float32)
        outs = [None] * T
        ts = range(T - 1, -1, -1) if reverse else range(T)
        for t in ts:
            gates = state[:, t, :] @ wih + h @ whh + b
            i = jax.nn.sigmoid(gates[:, 0:H])
            f = jax.nn.sigmoid(gates[:, H:2 * H])
            g = jnp.tanh(gates[:, 2 * H:3 * H])
            o = jax.nn.sigmoid(gates[:, 3 * H:4 * H])
            c = f * c + i * g
            h = o * jnp.tanh(c)
            outs[t] = h
        return jnp.stack(outs, axis=1)                          # (B, T, H)

    fwd = run_dir(params["wih_f"], params["whh_f"], params["b_f"], False)
    bwd = run_dir(params["wih_b"], params["whh_b"], params["b_b"], True)
    out = jnp.concatenate([fwd, bwd], axis=-1)                  # (B, T, 2H)

    scores = jnp.einsum("btd,bsd->bts", out, out) / float(2 * H) ** 0.5
    w = jax.nn.softmax(scores, axis=-1)                         # (B, T, T)
    ctx = jnp.einsum("bts,bsd->btd", w, out)                    # (B, T, 2H)
    logits = ctx[:, -1, :] @ params["wfc"] + params["bfc"]      # (B, 6)
    return logits, w


if __name__ == "__main__":
    B, T, NUM_INPUTS, HIDDEN = 2, 8, 4, 32

    key = jax.random.PRNGKey(0)
    k_state, k_params = jax.random.split(key)
    state = jax.random.normal(k_state, (B, T, NUM_INPUTS), jnp.float32)
    params = init_params(k_params, NUM_INPUTS, HIDDEN)
    packed = prepare_actor_params(params)    # one-time, outside the hot path

    logits, w_act = jax.block_until_ready(actor_forward(state, packed))
    ref_logits, ref_w = jax.block_until_ready(reference_forward(state, params))

    assert logits.shape == (B, 6) and w_act.shape == (B, T, T)
    # bf16 MXU operands in the LSTM recurrence / input projection accumulate
    # ~1e-3-scale rounding over the T-step chain, which flows into the logits;
    # the attention scores / softmax / FC stay f32 with an exact reciprocal,
    # so the attention weights match the f32 reference much more tightly.
    assert jnp.allclose(w_act, ref_w, rtol=2e-3, atol=2e-3)
    assert jnp.allclose(logits, ref_logits, rtol=5e-3, atol=5e-3)
    print("KERNEL_OK")
</pallas_src>

<mosaic_0001>
module attributes {stable_mosaic.version = 11 : i64} {
  func.func @actor_kernel(%arg0: memref<2x8x4xf32, #tpu.memory_space<vmem>>, %arg1: memref<4x256xf32, #tpu.memory_space<vmem>>, %arg2: memref<1x256xf32, #tpu.memory_space<vmem>>, %arg3: memref<64x256xf32, #tpu.memory_space<vmem>>, %arg4: memref<64x6xf32, #tpu.memory_space<vmem>>, %arg5: memref<1x6xf32, #tpu.memory_space<vmem>>, %arg6: memref<2x6xf32, #tpu.memory_space<vmem>>, %arg7: memref<2x8x8xf32, #tpu.memory_space<vmem>>) attributes {dimension_semantics = [], scalar_prefetch = 0 : i64, scratch_operands = 0 : i64, tpu.core_type = #tpu.core_type<tc>} {
    %c0 = arith.constant 0 : index
    %c0_0 = arith.constant 0 : index
    %0 = vector.load %arg1[%c0, %c0_0] : memref<4x256xf32, #tpu.memory_space<vmem>>, vector<4x256xf32>
    %1 = arith.truncf %0 : vector<4x256xf32> to vector<4x256xbf16>
    %c0_1 = arith.constant 0 : index
    %c0_2 = arith.constant 0 : index
    %2 = vector.load %arg2[%c0_1, %c0_2] : memref<1x256xf32, #tpu.memory_space<vmem>>, vector<1x256xf32>
    %c0_3 = arith.constant 0 : index
    %c0_4 = arith.constant 0 : index
    %c0_5 = arith.constant 0 : index
    %3 = vector.load %arg0[%c0_3, %c0_4, %c0_5] : memref<2x8x4xf32, #tpu.memory_space<vmem>>, vector<1x8x4xf32>
    %4 = vector.shape_cast %3 : vector<1x8x4xf32> to vector<8x4xf32>
    %5 = arith.truncf %4 : vector<8x4xf32> to vector<8x4xbf16>
    %cst = arith.constant dense<0.000000e+00> : vector<8x256xf32>
    %6 = tpu.matmul %5, %1, %cst {dimension_numbers = #tpu.dot_dimension_numbers<[1], [0], [0], [1], [0, 0, 1, 1], [], []>} : vector<8x4xbf16>, vector<4x256xbf16>, vector<8x256xf32> -> vector<8x256xf32>
    %7 = vector.broadcast %2 : vector<1x256xf32> to vector<8x256xf32>
    %8 = arith.addf %6, %7 : vector<8x256xf32>
    %c1 = arith.constant 1 : index
    %c0_6 = arith.constant 0 : index
    %c0_7 = arith.constant 0 : index
    %9 = vector.load %arg0[%c1, %c0_6, %c0_7] : memref<2x8x4xf32, #tpu.memory_space<vmem>>, vector<1x8x4xf32>
    %10 = vector.shape_cast %9 : vector<1x8x4xf32> to vector<8x4xf32>
    %11 = arith.truncf %10 : vector<8x4xf32> to vector<8x4xbf16>
    %cst_8 = arith.constant dense<0.000000e+00> : vector<8x256xf32>
    %12 = tpu.matmul %11, %1, %cst_8 {dimension_numbers = #tpu.dot_dimension_numbers<[1], [0], [0], [1], [0, 0, 1, 1], [], []>} : vector<8x4xbf16>, vector<4x256xbf16>, vector<8x256xf32> -> vector<8x256xf32>
    %13 = vector.broadcast %2 : vector<1x256xf32> to vector<8x256xf32>
    %14 = arith.addf %12, %13 : vector<8x256xf32>
    %15 = vector.extract_strided_slice %8 {offsets = [0, 0], sizes = [1, 128], strides = [1, 1]} : vector<8x256xf32> to vector<1x128xf32>
    %16 = vector.extract_strided_slice %8 {offsets = [7, 128], sizes = [1, 128], strides = [1, 1]} : vector<8x256xf32> to vector<1x128xf32>
    %17 = tpu.concatenate %15, %16 in 1 : vector<1x128xf32>, vector<1x128xf32> -> vector<1x256xf32>
    %18 = vector.extract_strided_slice %14 {offsets = [0, 0], sizes = [1, 128], strides = [1, 1]} : vector<8x256xf32> to vector<1x128xf32>
    %19 = vector.extract_strided_slice %14 {offsets = [7, 128], sizes = [1, 128], strides = [1, 1]} : vector<8x256xf32> to vector<1x128xf32>
    %20 = tpu.concatenate %18, %19 in 1 : vector<1x128xf32>, vector<1x128xf32> -> vector<1x256xf32>
    %21 = tpu.concatenate %17, %20 in 0 : vector<1x256xf32>, vector<1x256xf32> -> vector<2x256xf32>
    %22 = vector.extract_strided_slice %8 {offsets = [1, 0], sizes = [1, 128], strides = [1, 1]} : vector<8x256xf32> to vector<1x128xf32>
    %23 = vector.extract_strided_slice %8 {offsets = [6, 128], sizes = [1, 128], strides = [1, 1]} : vector<8x256xf32> to vector<1x128xf32>
    %24 = tpu.concatenate %22, %23 in 1 : vector<1x128xf32>, vector<1x128xf32> -> vector<1x256xf32>
    %25 = vector.extract_strided_slice %14 {offsets = [1, 0], sizes = [1, 128], strides = [1, 1]} : vector<8x256xf32> to vector<1x128xf32>
    %26 = vector.extract_strided_slice %14 {offsets = [6, 128], sizes = [1, 128], strides = [1, 1]} : vector<8x256xf32> to vector<1x128xf32>
    %27 = tpu.concatenate %25, %26 in 1 : vector<1x128xf32>, vector<1x128xf32> -> vector<1x256xf32>
    %28 = tpu.concatenate %24, %27 in 0 : vector<1x256xf32>, vector<1x256xf32> -> vector<2x256xf32>
    %29 = vector.extract_strided_slice %8 {offsets = [2, 0], sizes = [1, 128], strides = [1, 1]} : vector<8x256xf32> to vector<1x128xf32>
    %30 = vector.extract_strided_slice %8 {offsets = [5, 128], sizes = [1, 128], strides = [1, 1]} : vector<8x256xf32> to vector<1x128xf32>
    %31 = tpu.concatenate %29, %30 in 1 : vector<1x128xf32>, vector<1x128xf32> -> vector<1x256xf32>
    %32 = vector.extract_strided_slice %14 {offsets = [2, 0], sizes = [1, 128], strides = [1, 1]} : vector<8x256xf32> to vector<1x128xf32>
    %33 = vector.extract_strided_slice %14 {offsets = [5, 128], sizes = [1, 128], strides = [1, 1]} : vector<8x256xf32> to vector<1x128xf32>
    %34 = tpu.concatenate %32, %33 in 1 : vector<1x128xf32>, vector<1x128xf32> -> vector<1x256xf32>
    %35 = tpu.concatenate %31, %34 in 0 : vector<1x256xf32>, vector<1x256xf32> -> vector<2x256xf32>
    %36 = vector.extract_strided_slice %8 {offsets = [3, 0], sizes = [1, 128], strides = [1, 1]} : vector<8x256xf32> to vector<1x128xf32>
    %37 = vector.extract_strided_slice %8 {offsets = [4, 128], sizes = [1, 128], strides = [1, 1]} : vector<8x256xf32> to vector<1x128xf32>
    %38 = tpu.concatenate %36, %37 in 1 : vector<1x128xf32>, vector<1x128xf32> -> vector<1x256xf32>
    %39 = vector.extract_strided_slice %14 {offsets = [3, 0], sizes = [1, 128], strides = [1, 1]} : vector<8x256xf32> to vector<1x128xf32>
    %40 = vector.extract_strided_slice %14 {offsets = [4, 128], sizes = [1, 128], strides = [1, 1]} : vector<8x256xf32> to vector<1x128xf32>
    %41 = tpu.concatenate %39, %40 in 1 : vector<1x128xf32>, vector<1x128xf32> -> vector<1x256xf32>
    %42 = tpu.concatenate %38, %41 in 0 : vector<1x256xf32>, vector<1x256xf32> -> vector<2x256xf32>
    %43 = vector.extract_strided_slice %8 {offsets = [4, 0], sizes = [1, 128], strides = [1, 1]} : vector<8x256xf32> to vector<1x128xf32>
    %44 = vector.extract_strided_slice %8 {offsets = [3, 128], sizes = [1, 128], strides = [1, 1]} : vector<8x256xf32> to vector<1x128xf32>
    %45 = tpu.concatenate %43, %44 in 1 : vector<1x128xf32>, vector<1x128xf32> -> vector<1x256xf32>
    %46 = vector.extract_strided_slice %14 {offsets = [4, 0], sizes = [1, 128], strides = [1, 1]} : vector<8x256xf32> to vector<1x128xf32>
    %47 = vector.extract_strided_slice %14 {offsets = [3, 128], sizes = [1, 128], strides = [1, 1]} : vector<8x256xf32> to vector<1x128xf32>
    %48 = tpu.concatenate %46, %47 in 1 : vector<1x128xf32>, vector<1x128xf32> -> vector<1x256xf32>
    %49 = tpu.concatenate %45, %48 in 0 : vector<1x256xf32>, vector<1x256xf32> -> vector<2x256xf32>
    %50 = vector.extract_strided_slice %8 {offsets = [5, 0], sizes = [1, 128], strides = [1, 1]} : vector<8x256xf32> to vector<1x128xf32>
    %51 = vector.extract_strided_slice %8 {offsets = [2, 128], sizes = [1, 128], strides = [1, 1]} : vector<8x256xf32> to vector<1x128xf32>
    %52 = tpu.concatenate %50, %51 in 1 : vector<1x128xf32>, vector<1x128xf32> -> vector<1x256xf32>
    %53 = vector.extract_strided_slice %14 {offsets = [5, 0], sizes = [1, 128], strides = [1, 1]} : vector<8x256xf32> to vector<1x128xf32>
    %54 = vector.extract_strided_slice %14 {offsets = [2, 128], sizes = [1, 128], strides = [1, 1]} : vector<8x256xf32> to vector<1x128xf32>
    %55 = tpu.concatenate %53, %54 in 1 : vector<1x128xf32>, vector<1x128xf32> -> vector<1x256xf32>
    %56 = tpu.concatenate %52, %55 in 0 : vector<1x256xf32>, vector<1x256xf32> -> vector<2x256xf32>
    %57 = vector.extract_strided_slice %8 {offsets = [6, 0], sizes = [1, 128], strides = [1, 1]} : vector<8x256xf32> to vector<1x128xf32>
    %58 = vector.extract_strided_slice %8 {offsets = [1, 128], sizes = [1, 128], strides = [1, 1]} : vector<8x256xf32> to vector<1x128xf32>
    %59 = tpu.concatenate %57, %58 in 1 : vector<1x128xf32>, vector<1x128xf32> -> vector<1x256xf32>
    %60 = vector.extract_strided_slice %14 {offsets = [6, 0], sizes = [1, 128], strides = [1, 1]} : vector<8x256xf32> to vector<1x128xf32>
    %61 = vector.extract_strided_slice %14 {offsets = [1, 128], sizes = [1, 128], strides = [1, 1]} : vector<8x256xf32> to vector<1x128xf32>
    %62 = tpu.concatenate %60, %61 in 1 : vector<1x128xf32>, vector<1x128xf32> -> vector<1x256xf32>
    %63 = tpu.concatenate %59, %62 in 0 : vector<1x256xf32>, vector<1x256xf32> -> vector<2x256xf32>
    %64 = vector.extract_strided_slice %8 {offsets = [7, 0], sizes = [1, 128], strides = [1, 1]} : vector<8x256xf32> to vector<1x128xf32>
    %65 = vector.extract_strided_slice %8 {offsets = [0, 128], sizes = [1, 128], strides = [1, 1]} : vector<8x256xf32> to vector<1x128xf32>
    %66 = tpu.concatenate %64, %65 in 1 : vector<1x128xf32>, vector<1x128xf32> -> vector<1x256xf32>
    %67 = vector.extract_strided_slice %14 {offsets = [7, 0], sizes = [1, 128], strides = [1, 1]} : vector<8x256xf32> to vector<1x128xf32>
    %68 = vector.extract_strided_slice %14 {offsets = [0, 128], sizes = [1, 128], strides = [1, 1]} : vector<8x256xf32> to vector<1x128xf32>
    %69 = tpu.concatenate %67, %68 in 1 : vector<1x128xf32>, vector<1x128xf32> -> vector<1x256xf32>
    %70 = tpu.concatenate %66, %69 in 0 : vector<1x256xf32>, vector<1x256xf32> -> vector<2x256xf32>
    %c0_9 = arith.constant 0 : index
    %c0_10 = arith.constant 0 : index
    %71 = vector.load %arg3[%c0_9, %c0_10] : memref<64x256xf32, #tpu.memory_space<vmem>>, vector<64x256xf32>
    %72 = arith.truncf %71 : vector<64x256xf32> to vector<64x256xbf16>
    %cst_11 = arith.constant 0.000000e+00 : f32
    %73 = vector.broadcast %cst_11 : f32 to vector<2x32xf32>
    %cst_12 = arith.constant 0.000000e+00 : f32
    %74 = vector.broadcast %cst_12 : f32 to vector<2x32xf32>
    %75 = arith.negf %21 : vector<2x256xf32>
    %76 = math.exp %75 : vector<2x256xf32>
    %cst_13 = arith.constant 1.000000e+00 : f32
    %77 = vector.broadcast %cst_13 : f32 to vector<2x256xf32>
    %78 = arith.addf %77, %76 : vector<2x256xf32>
    %79 = arith.divf %77, %78 : vector<2x256xf32>
    %80 = math.tanh %21 : vector<2x256xf32>
    %81 = vector.extract_strided_slice %79 {offsets = [0, 32], sizes = [2, 32], strides = [1, 1]} : vector<2x256xf32> to vector<2x32xf32>
    %82 = arith.mulf %81, %73 : vector<2x32xf32>
    %83 = vector.extract_strided_slice %79 {offsets = [0, 0], sizes = [2, 32], strides = [1, 1]} : vector<2x256xf32> to vector<2x32xf32>
    %84 = vector.extract_strided_slice %80 {offsets = [0, 64], sizes = [2, 32], strides = [1, 1]} : vector<2x256xf32> to vector<2x32xf32>
    %85 = arith.mulf %83, %84 : vector<2x32xf32>
    %86 = arith.addf %82, %85 : vector<2x32xf32>
    %87 = vector.extract_strided_slice %79 {offsets = [0, 96], sizes = [2, 32], strides = [1, 1]} : vector<2x256xf32> to vector<2x32xf32>
    %88 = math.tanh %86 : vector<2x32xf32>
    %89 = arith.mulf %87, %88 : vector<2x32xf32>
    %90 = vector.extract_strided_slice %79 {offsets = [0, 160], sizes = [2, 32], strides = [1, 1]} : vector<2x256xf32> to vector<2x32xf32>
    %91 = arith.mulf %90, %74 : vector<2x32xf32>
    %92 = vector.extract_strided_slice %79 {offsets = [0, 128], sizes = [2, 32], strides = [1, 1]} : vector<2x256xf32> to vector<2x32xf32>
    %93 = vector.extract_strided_slice %80 {offsets = [0, 192], sizes = [2, 32], strides = [1, 1]} : vector<2x256xf32> to vector<2x32xf32>
    %94 = arith.mulf %92, %93 : vector<2x32xf32>
    %95 = arith.addf %91, %94 : vector<2x32xf32>
    %96 = vector.extract_strided_slice %79 {offsets = [0, 224], sizes = [2, 32], strides = [1, 1]} : vector<2x256xf32> to vector<2x32xf32>
    %97 = math.tanh %95 : vector<2x32xf32>
    %98 = arith.mulf %96, %97 : vector<2x32xf32>
    %99 = tpu.concatenate %89, %98 in 1 : vector<2x32xf32>, vector<2x32xf32> -> vector<2x64xf32>
    %100 = arith.truncf %99 : vector<2x64xf32> to vector<2x64xbf16>
    %cst_14 = arith.constant dense<0.000000e+00> : vector<2x256xf32>
    %101 = tpu.matmul %100, %72, %cst_14 {dimension_numbers = #tpu.dot_dimension_numbers<[1], [0], [0], [1], [0, 0, 1, 1], [], []>} : vector<2x64xbf16>, vector<64x256xbf16>, vector<2x256xf32> -> vector<2x256xf32>
    %102 = arith.addf %28, %101 : vector<2x256xf32>
    %103 = arith.negf %102 : vector<2x256xf32>
    %104 = math.exp %103 : vector<2x256xf32>
    %cst_15 = arith.constant 1.000000e+00 : f32
    %105 = vector.broadcast %cst_15 : f32 to vector<2x256xf32>
    %106 = arith.addf %105, %104 : vector<2x256xf32>
    %107 = arith.divf %105, %106 : vector<2x256xf32>
    %108 = math.tanh %102 : vector<2x256xf32>
    %109 = vector.extract_strided_slice %107 {offsets = [0, 32], sizes = [2, 32], strides = [1, 1]} : vector<2x256xf32> to vector<2x32xf32>
    %110 = arith.mulf %109, %86 : vector<2x32xf32>
    %111 = vector.extract_strided_slice %107 {offsets = [0, 0], sizes = [2, 32], strides = [1, 1]} : vector<2x256xf32> to vector<2x32xf32>
    %112 = vector.extract_strided_slice %108 {offsets = [0, 64], sizes = [2, 32], strides = [1, 1]} : vector<2x256xf32> to vector<2x32xf32>
    %113 = arith.mulf %111, %112 : vector<2x32xf32>
    %114 = arith.addf %110, %113 : vector<2x32xf32>
    %115 = vector.extract_strided_slice %107 {offsets = [0, 96], sizes = [2, 32], strides = [1, 1]} : vector<2x256xf32> to vector<2x32xf32>
    %116 = math.tanh %114 : vector<2x32xf32>
    %117 = arith.mulf %115, %116 : vector<2x32xf32>
    %118 = vector.extract_strided_slice %107 {offsets = [0, 160], sizes = [2, 32], strides = [1, 1]} : vector<2x256xf32> to vector<2x32xf32>
    %119 = arith.mulf %118, %95 : vector<2x32xf32>
    %120 = vector.extract_strided_slice %107 {offsets = [0, 128], sizes = [2, 32], strides = [1, 1]} : vector<2x256xf32> to vector<2x32xf32>
    %121 = vector.extract_strided_slice %108 {offsets = [0, 192], sizes = [2, 32], strides = [1, 1]} : vector<2x256xf32> to vector<2x32xf32>
    %122 = arith.mulf %120, %121 : vector<2x32xf32>
    %123 = arith.addf %119, %122 : vector<2x32xf32>
    %124 = vector.extract_strided_slice %107 {offsets = [0, 224], sizes = [2, 32], strides = [1, 1]} : vector<2x256xf32> to vector<2x32xf32>
    %125 = math.tanh %123 : vector<2x32xf32>
    %126 = arith.mulf %124, %125 : vector<2x32xf32>
    %127 = tpu.concatenate %117, %126 in 1 : vector<2x32xf32>, vector<2x32xf32> -> vector<2x64xf32>
    %128 = arith.truncf %127 : vector<2x64xf32> to vector<2x64xbf16>
    %cst_16 = arith.constant dense<0.000000e+00> : vector<2x256xf32>
    %129 = tpu.matmul %128, %72, %cst_16 {dimension_numbers = #tpu.dot_dimension_numbers<[1], [0], [0], [1], [0, 0, 1, 1], [], []>} : vector<2x64xbf16>, vector<64x256xbf16>, vector<2x256xf32> -> vector<2x256xf32>
    %130 = arith.addf %35, %129 : vector<2x256xf32>
    %131 = arith.negf %130 : vector<2x256xf32>
    %132 = math.exp %131 : vector<2x256xf32>
    %cst_17 = arith.constant 1.000000e+00 : f32
    %133 = vector.broadcast %cst_17 : f32 to vector<2x256xf32>
    %134 = arith.addf %133, %132 : vector<2x256xf32>
    %135 = arith.divf %133, %134 : vector<2x256xf32>
    %136 = math.tanh %130 : vector<2x256xf32>
    %137 = vector.extract_strided_slice %135 {offsets = [0, 32], sizes = [2, 32], strides = [1, 1]} : vector<2x256xf32> to vector<2x32xf32>
    %138 = arith.mulf %137, %114 : vector<2x32xf32>
    %139 = vector.extract_strided_slice %135 {offsets = [0, 0], sizes = [2, 32], strides = [1, 1]} : vector<2x256xf32> to vector<2x32xf32>
    %140 = vector.extract_strided_slice %136 {offsets = [0, 64], sizes = [2, 32], strides = [1, 1]} : vector<2x256xf32> to vector<2x32xf32>
    %141 = arith.mulf %139, %140 : vector<2x32xf32>
    %142 = arith.addf %138, %141 : vector<2x32xf32>
    %143 = vector.extract_strided_slice %135 {offsets = [0, 96], sizes = [2, 32], strides = [1, 1]} : vector<2x256xf32> to vector<2x32xf32>
    %144 = math.tanh %142 : vector<2x32xf32>
    %145 = arith.mulf %143, %144 : vector<2x32xf32>
    %146 = vector.extract_strided_slice %135 {offsets = [0, 160], sizes = [2, 32], strides = [1, 1]} : vector<2x256xf32> to vector<2x32xf32>
    %147 = arith.mulf %146, %123 : vector<2x32xf32>
    %148 = vector.extract_strided_slice %135 {offsets = [0, 128], sizes = [2, 32], strides = [1, 1]} : vector<2x256xf32> to vector<2x32xf32>
    %149 = vector.extract_strided_slice %136 {offsets = [0, 192], sizes = [2, 32], strides = [1, 1]} : vector<2x256xf32> to vector<2x32xf32>
    %150 = arith.mulf %148, %149 : vector<2x32xf32>
    %151 = arith.addf %147, %150 : vector<2x32xf32>
    %152 = vector.extract_strided_slice %135 {offsets = [0, 224], sizes = [2, 32], strides = [1, 1]} : vector<2x256xf32> to vector<2x32xf32>
    %153 = math.tanh %151 : vector<2x32xf32>
    %154 = arith.mulf %152, %153 : vector<2x32xf32>
    %155 = tpu.concatenate %145, %154 in 1 : vector<2x32xf32>, vector<2x32xf32> -> vector<2x64xf32>
    %156 = arith.truncf %155 : vector<2x64xf32> to vector<2x64xbf16>
    %cst_18 = arith.constant dense<0.000000e+00> : vector<2x256xf32>
    %157 = tpu.matmul %156, %72, %cst_18 {dimension_numbers = #tpu.dot_dimension_numbers<[1], [0], [0], [1], [0, 0, 1, 1], [], []>} : vector<2x64xbf16>, vector<64x256xbf16>, vector<2x256xf32> -> vector<2x256xf32>
    %158 = arith.addf %42, %157 : vector<2x256xf32>
    %159 = arith.negf %158 : vector<2x256xf32>
    %160 = math.exp %159 : vector<2x256xf32>
    %cst_19 = arith.constant 1.000000e+00 : f32
    %161 = vector.broadcast %cst_19 : f32 to vector<2x256xf32>
    %162 = arith.addf %161, %160 : vector<2x256xf32>
    %163 = arith.divf %161, %162 : vector<2x256xf32>
    %164 = math.tanh %158 : vector<2x256xf32>
    %165 = vector.extract_strided_slice %163 {offsets = [0, 32], sizes = [2, 32], strides = [1, 1]} : vector<2x256xf32> to vector<2x32xf32>
    %166 = arith.mulf %165, %142 : vector<2x32xf32>
    %167 = vector.extract_strided_slice %163 {offsets = [0, 0], sizes = [2, 32], strides = [1, 1]} : vector<2x256xf32> to vector<2x32xf32>
    %168 = vector.extract_strided_slice %164 {offsets = [0, 64], sizes = [2, 32], strides = [1, 1]} : vector<2x256xf32> to vector<2x32xf32>
    %169 = arith.mulf %167, %168 : vector<2x32xf32>
    %170 = arith.addf %166, %169 : vector<2x32xf32>
    %171 = vector.extract_strided_slice %163 {offsets = [0, 96], sizes = [2, 32], strides = [1, 1]} : vector<2x256xf32> to vector<2x32xf32>
    %172 = math.tanh %170 : vector<2x32xf32>
    %173 = arith.mulf %171, %172 : vector<2x32xf32>
    %174 = vector.extract_strided_slice %163 {offsets = [0, 160], sizes = [2, 32], strides = [1, 1]} : vector<2x256xf32> to vector<2x32xf32>
    %175 = arith.mulf %174, %151 : vector<2x32xf32>
    %176 = vector.extract_strided_slice %163 {offsets = [0, 128], sizes = [2, 32], strides = [1, 1]} : vector<2x256xf32> to vector<2x32xf32>
    %177 = vector.extract_strided_slice %164 {offsets = [0, 192], sizes = [2, 32], strides = [1, 1]} : vector<2x256xf32> to vector<2x32xf32>
    %178 = arith.mulf %176, %177 : vector<2x32xf32>
    %179 = arith.addf %175, %178 : vector<2x32xf32>
    %180 = vector.extract_strided_slice %163 {offsets = [0, 224], sizes = [2, 32], strides = [1, 1]} : vector<2x256xf32> to vector<2x32xf32>
    %181 = math.tanh %179 : vector<2x32xf32>
    %182 = arith.mulf %180, %181 : vector<2x32xf32>
    %183 = tpu.concatenate %173, %182 in 1 : vector<2x32xf32>, vector<2x32xf32> -> vector<2x64xf32>
    %184 = arith.truncf %183 : vector<2x64xf32> to vector<2x64xbf16>
    %cst_20 = arith.constant dense<0.000000e+00> : vector<2x256xf32>
    %185 = tpu.matmul %184, %72, %cst_20 {dimension_numbers = #tpu.dot_dimension_numbers<[1], [0], [0], [1], [0, 0, 1, 1], [], []>} : vector<2x64xbf16>, vector<64x256xbf16>, vector<2x256xf32> -> vector<2x256xf32>
    %186 = arith.addf %49, %185 : vector<2x256xf32>
    %187 = arith.negf %186 : vector<2x256xf32>
    %188 = math.exp %187 : vector<2x256xf32>
    %cst_21 = arith.constant 1.000000e+00 : f32
    %189 = vector.broadcast %cst_21 : f32 to vector<2x256xf32>
    %190 = arith.addf %189, %188 : vector<2x256xf32>
    %191 = arith.divf %189, %190 : vector<2x256xf32>
    %192 = math.tanh %186 : vector<2x256xf32>
    %193 = vector.extract_strided_slice %191 {offsets = [0, 32], sizes = [2, 32], strides = [1, 1]} : vector<2x256xf32> to vector<2x32xf32>
    %194 = arith.mulf %193, %170 : vector<2x32xf32>
    %195 = vector.extract_strided_slice %191 {offsets = [0, 0], sizes = [2, 32], strides = [1, 1]} : vector<2x256xf32> to vector<2x32xf32>
    %196 = vector.extract_strided_slice %192 {offsets = [0, 64], sizes = [2, 32], strides = [1, 1]} : vector<2x256xf32> to vector<2x32xf32>
    %197 = arith.mulf %195, %196 : vector<2x32xf32>
    %198 = arith.addf %194, %197 : vector<2x32xf32>
    %199 = vector.extract_strided_slice %191 {offsets = [0, 96], sizes = [2, 32], strides = [1, 1]} : vector<2x256xf32> to vector<2x32xf32>
    %200 = math.tanh %198 : vector<2x32xf32>
    %201 = arith.mulf %199, %200 : vector<2x32xf32>
    %202 = vector.extract_strided_slice %191 {offsets = [0, 160], sizes = [2, 32], strides = [1, 1]} : vector<2x256xf32> to vector<2x32xf32>
    %203 = arith.mulf %202, %179 : vector<2x32xf32>
    %204 = vector.extract_strided_slice %191 {offsets = [0, 128], sizes = [2, 32], strides = [1, 1]} : vector<2x256xf32> to vector<2x32xf32>
    %205 = vector.extract_strided_slice %192 {offsets = [0, 192], sizes = [2, 32], strides = [1, 1]} : vector<2x256xf32> to vector<2x32xf32>
    %206 = arith.mulf %204, %205 : vector<2x32xf32>
    %207 = arith.addf %203, %206 : vector<2x32xf32>
    %208 = vector.extract_strided_slice %191 {offsets = [0, 224], sizes = [2, 32], strides = [1, 1]} : vector<2x256xf32> to vector<2x32xf32>
    %209 = math.tanh %207 : vector<2x32xf32>
    %210 = arith.mulf %208, %209 : vector<2x32xf32>
    %211 = tpu.concatenate %201, %210 in 1 : vector<2x32xf32>, vector<2x32xf32> -> vector<2x64xf32>
    %212 = arith.truncf %211 : vector<2x64xf32> to vector<2x64xbf16>
    %cst_22 = arith.constant dense<0.000000e+00> : vector<2x256xf32>
    %213 = tpu.matmul %212, %72, %cst_22 {dimension_numbers = #tpu.dot_dimension_numbers<[1], [0], [0], [1], [0, 0, 1, 1], [], []>} : vector<2x64xbf16>, vector<64x256xbf16>, vector<2x256xf32> -> vector<2x256xf32>
    %214 = arith.addf %56, %213 : vector<2x256xf32>
    %215 = arith.negf %214 : vector<2x256xf32>
    %216 = math.exp %215 : vector<2x256xf32>
    %cst_23 = arith.constant 1.000000e+00 : f32
    %217 = vector.broadcast %cst_23 : f32 to vector<2x256xf32>
    %218 = arith.addf %217, %216 : vector<2x256xf32>
    %219 = arith.divf %217, %218 : vector<2x256xf32>
    %220 = math.tanh %214 : vector<2x256xf32>
    %221 = vector.extract_strided_slice %219 {offsets = [0, 32], sizes = [2, 32], strides = [1, 1]} : vector<2x256xf32> to vector<2x32xf32>
    %222 = arith.mulf %221, %198 : vector<2x32xf32>
    %223 = vector.extract_strided_slice %219 {offsets = [0, 0], sizes = [2, 32], strides = [1, 1]} : vector<2x256xf32> to vector<2x32xf32>
    %224 = vector.extract_strided_slice %220 {offsets = [0, 64], sizes = [2, 32], strides = [1, 1]} : vector<2x256xf32> to vector<2x32xf32>
    %225 = arith.mulf %223, %224 : vector<2x32xf32>
    %226 = arith.addf %222, %225 : vector<2x32xf32>
    %227 = vector.extract_strided_slice %219 {offsets = [0, 96], sizes = [2, 32], strides = [1, 1]} : vector<2x256xf32> to vector<2x32xf32>
    %228 = math.tanh %226 : vector<2x32xf32>
    %229 = arith.mulf %227, %228 : vector<2x32xf32>
    %230 = vector.extract_strided_slice %219 {offsets = [0, 160], sizes = [2, 32], strides = [1, 1]} : vector<2x256xf32> to vector<2x32xf32>
    %231 = arith.mulf %230, %207 : vector<2x32xf32>
    %232 = vector.extract_strided_slice %219 {offsets = [0, 128], sizes = [2, 32], strides = [1, 1]} : vector<2x256xf32> to vector<2x32xf32>
    %233 = vector.extract_strided_slice %220 {offsets = [0, 192], sizes = [2, 32], strides = [1, 1]} : vector<2x256xf32> to vector<2x32xf32>
    %234 = arith.mulf %232, %233 : vector<2x32xf32>
    %235 = arith.addf %231, %234 : vector<2x32xf32>
    %236 = vector.extract_strided_slice %219 {offsets = [0, 224], sizes = [2, 32], strides = [1, 1]} : vector<2x256xf32> to vector<2x32xf32>
    %237 = math.tanh %235 : vector<2x32xf32>
    %238 = arith.mulf %236, %237 : vector<2x32xf32>
    %239 = tpu.concatenate %229, %238 in 1 : vector<2x32xf32>, vector<2x32xf32> -> vector<2x64xf32>
    %240 = arith.truncf %239 : vector<2x64xf32> to vector<2x64xbf16>
    %cst_24 = arith.constant dense<0.000000e+00> : vector<2x256xf32>
    %241 = tpu.matmul %240, %72, %cst_24 {dimension_numbers = #tpu.dot_dimension_numbers<[1], [0], [0], [1], [0, 0, 1, 1], [], []>} : vector<2x64xbf16>, vector<64x256xbf16>, vector<2x256xf32> -> vector<2x256xf32>
    %242 = arith.addf %63, %241 : vector<2x256xf32>
    %243 = arith.negf %242 : vector<2x256xf32>
    %244 = math.exp %243 : vector<2x256xf32>
    %cst_25 = arith.constant 1.000000e+00 : f32
    %245 = vector.broadcast %cst_25 : f32 to vector<2x256xf32>
    %246 = arith.addf %245, %244 : vector<2x256xf32>
    %247 = arith.divf %245, %246 : vector<2x256xf32>
    %248 = math.tanh %242 : vector<2x256xf32>
    %249 = vector.extract_strided_slice %247 {offsets = [0, 32], sizes = [2, 32], strides = [1, 1]} : vector<2x256xf32> to vector<2x32xf32>
    %250 = arith.mulf %249, %226 : vector<2x32xf32>
    %251 = vector.extract_strided_slice %247 {offsets = [0, 0], sizes = [2, 32], strides = [1, 1]} : vector<2x256xf32> to vector<2x32xf32>
    %252 = vector.extract_strided_slice %248 {offsets = [0, 64], sizes = [2, 32], strides = [1, 1]} : vector<2x256xf32> to vector<2x32xf32>
    %253 = arith.mulf %251, %252 : vector<2x32xf32>
    %254 = arith.addf %250, %253 : vector<2x32xf32>
    %255 = vector.extract_strided_slice %247 {offsets = [0, 96], sizes = [2, 32], strides = [1, 1]} : vector<2x256xf32> to vector<2x32xf32>
    %256 = math.tanh %254 : vector<2x32xf32>
    %257 = arith.mulf %255, %256 : vector<2x32xf32>
    %258 = vector.extract_strided_slice %247 {offsets = [0, 160], sizes = [2, 32], strides = [1, 1]} : vector<2x256xf32> to vector<2x32xf32>
    %259 = arith.mulf %258, %235 : vector<2x32xf32>
    %260 = vector.extract_strided_slice %247 {offsets = [0, 128], sizes = [2, 32], strides = [1, 1]} : vector<2x256xf32> to vector<2x32xf32>
    %261 = vector.extract_strided_slice %248 {offsets = [0, 192], sizes = [2, 32], strides = [1, 1]} : vector<2x256xf32> to vector<2x32xf32>
    %262 = arith.mulf %260, %261 : vector<2x32xf32>
    %263 = arith.addf %259, %262 : vector<2x32xf32>
    %264 = vector.extract_strided_slice %247 {offsets = [0, 224], sizes = [2, 32], strides = [1, 1]} : vector<2x256xf32> to vector<2x32xf32>
    %265 = math.tanh %263 : vector<2x32xf32>
    %266 = arith.mulf %264, %265 : vector<2x32xf32>
    %267 = tpu.concatenate %257, %266 in 1 : vector<2x32xf32>, vector<2x32xf32> -> vector<2x64xf32>
    %268 = arith.truncf %267 : vector<2x64xf32> to vector<2x64xbf16>
    %cst_26 = arith.constant dense<0.000000e+00> : vector<2x256xf32>
    %269 = tpu.matmul %268, %72, %cst_26 {dimension_numbers = #tpu.dot_dimension_numbers<[1], [0], [0], [1], [0, 0, 1, 1], [], []>} : vector<2x64xbf16>, vector<64x256xbf16>, vector<2x256xf32> -> vector<2x256xf32>
    %270 = arith.addf %70, %269 : vector<2x256xf32>
    %271 = arith.negf %270 : vector<2x256xf32>
    %272 = math.exp %271 : vector<2x256xf32>
    %cst_27 = arith.constant 1.000000e+00 : f32
    %273 = vector.broadcast %cst_27 : f32 to vector<2x256xf32>
    %274 = arith.addf %273, %272 : vector<2x256xf32>
    %275 = arith.divf %273, %274 : vector<2x256xf32>
    %276 = math.tanh %270 : vector<2x256xf32>
    %277 = vector.extract_strided_slice %275 {offsets = [0, 32], sizes = [2, 32], strides = [1, 1]} : vector<2x256xf32> to vector<2x32xf32>
    %278 = arith.mulf %277, %254 : vector<2x32xf32>
    %279 = vector.extract_strided_slice %275 {offsets = [0, 0], sizes = [2, 32], strides = [1, 1]} : vector<2x256xf32> to vector<2x32xf32>
    %280 = vector.extract_strided_slice %276 {offsets = [0, 64], sizes = [2, 32], strides = [1, 1]} : vector<2x256xf32> to vector<2x32xf32>
    %281 = arith.mulf %279, %280 : vector<2x32xf32>
    %282 = arith.addf %278, %281 : vector<2x32xf32>
    %283 = vector.extract_strided_slice %275 {offsets = [0, 96], sizes = [2, 32], strides = [1, 1]} : vector<2x256xf32> to vector<2x32xf32>
    %284 = math.tanh %282 : vector<2x32xf32>
    %285 = arith.mulf %283, %284 : vector<2x32xf32>
    %286 = vector.extract_strided_slice %275 {offsets = [0, 160], sizes = [2, 32], strides = [1, 1]} : vector<2x256xf32> to vector<2x32xf32>
    %287 = arith.mulf %286, %263 : vector<2x32xf32>
    %288 = vector.extract_strided_slice %275 {offsets = [0, 128], sizes = [2, 32], strides = [1, 1]} : vector<2x256xf32> to vector<2x32xf32>
    %289 = vector.extract_strided_slice %276 {offsets = [0, 192], sizes = [2, 32], strides = [1, 1]} : vector<2x256xf32> to vector<2x32xf32>
    %290 = arith.mulf %288, %289 : vector<2x32xf32>
    %291 = arith.addf %287, %290 : vector<2x32xf32>
    %292 = vector.extract_strided_slice %275 {offsets = [0, 224], sizes = [2, 32], strides = [1, 1]} : vector<2x256xf32> to vector<2x32xf32>
    %293 = math.tanh %291 : vector<2x32xf32>
    %294 = arith.mulf %292, %293 : vector<2x32xf32>
    %295 = tpu.concatenate %89, %294 in 1 : vector<2x32xf32>, vector<2x32xf32> -> vector<2x64xf32>
    %296 = tpu.concatenate %117, %266 in 1 : vector<2x32xf32>, vector<2x32xf32> -> vector<2x64xf32>
    %297 = tpu.concatenate %145, %238 in 1 : vector<2x32xf32>, vector<2x32xf32> -> vector<2x64xf32>
    %298 = tpu.concatenate %173, %210 in 1 : vector<2x32xf32>, vector<2x32xf32> -> vector<2x64xf32>
    %299 = tpu.concatenate %201, %182 in 1 : vector<2x32xf32>, vector<2x32xf32> -> vector<2x64xf32>
    %300 = tpu.concatenate %229, %154 in 1 : vector<2x32xf32>, vector<2x32xf32> -> vector<2x64xf32>
    %301 = tpu.concatenate %257, %126 in 1 : vector<2x32xf32>, vector<2x32xf32> -> vector<2x64xf32>
    %302 = tpu.concatenate %285, %98 in 1 : vector<2x32xf32>, vector<2x32xf32> -> vector<2x64xf32>
    %303 = vector.shape_cast %295 : vector<2x64xf32> to vector<2x1x64xf32>
    %304 = vector.shape_cast %296 : vector<2x64xf32> to vector<2x1x64xf32>
    %305 = vector.shape_cast %297 : vector<2x64xf32> to vector<2x1x64xf32>
    %306 = vector.shape_cast %298 : vector<2x64xf32> to vector<2x1x64xf32>
    %307 = vector.shape_cast %299 : vector<2x64xf32> to vector<2x1x64xf32>
    %308 = vector.shape_cast %300 : vector<2x64xf32> to vector<2x1x64xf32>
    %309 = vector.shape_cast %301 : vector<2x64xf32> to vector<2x1x64xf32>
    %310 = vector.shape_cast %302 : vector<2x64xf32> to vector<2x1x64xf32>
    %311 = tpu.concatenate %303, %304, %305, %306, %307, %308, %309, %310 in 1 : vector<2x1x64xf32>, vector<2x1x64xf32>, vector<2x1x64xf32>, vector<2x1x64xf32>, vector<2x1x64xf32>, vector<2x1x64xf32>, vector<2x1x64xf32>, vector<2x1x64xf32> -> vector<2x8x64xf32>
    %cst_28 = arith.constant 1.250000e-01 : f32
    %312 = vector.broadcast %cst_28 : f32 to vector<2x8x64xf32>
    %313 = arith.mulf %311, %312 : vector<2x8x64xf32>
    "tpu.trace_start"() <{level = 10 : i32, message = "btd,bsd->bts"}> : () -> ()
    %cst_29 = arith.constant dense<0.000000e+00> : vector<2x8x8xf32>
    %314 = tpu.matmul %313, %311, %cst_29 {dimension_numbers = #tpu.dot_dimension_numbers<[2], [2], [1], [1], [0, 0, 0, 1, 1, 1], [0], [0]>} : vector<2x8x64xf32>, vector<2x8x64xf32>, vector<2x8x8xf32> -> vector<2x8x8xf32>
    "tpu.trace_stop"() : () -> ()
    %cst_30 = arith.constant dense<0xFF800000> : vector<2x8xf32>
    %315 = vector.multi_reduction <maximumf>, %314, %cst_30 [2] : vector<2x8x8xf32> to vector<2x8xf32>
    %316 = vector.shape_cast %315 : vector<2x8xf32> to vector<2x8x1xf32>
    %317 = vector.broadcast %316 : vector<2x8x1xf32> to vector<2x8x8xf32>
    %318 = arith.subf %314, %317 : vector<2x8x8xf32>
    %319 = math.exp %318 : vector<2x8x8xf32>
    %cst_31 = arith.constant dense<0.000000e+00> : vector<2x8xf32>
    %320 = vector.multi_reduction <add>, %319, %cst_31 [2] : vector<2x8x8xf32> to vector<2x8xf32>
    %321 = vector.shape_cast %320 : vector<2x8xf32> to vector<2x8x1xf32>
    %322 = vector.broadcast %321 : vector<2x8x1xf32> to vector<2x8x8xf32>
    %323 = arith.divf %319, %322 : vector<2x8x8xf32>
    %c0_32 = arith.constant 0 : index
    %c0_33 = arith.constant 0 : index
    %c0_34 = arith.constant 0 : index
    %324 = vector.load %arg7[%c0_32, %c0_33, %c0_34] : memref<2x8x8xf32, #tpu.memory_space<vmem>>, vector<2x8x8xf32>
    tpu.vector_store %arg7[%c0_32, %c0_33, %c0_34], %323 {strides = array<i32>} : memref<2x8x8xf32, #tpu.memory_space<vmem>>, vector<2x8x8xf32>,
    %325 = vector.extract_strided_slice %323 {offsets = [0, 7, 0], sizes = [2, 1, 8], strides = [1, 1, 1]} : vector<2x8x8xf32> to vector<2x1x8xf32>
    "tpu.trace_start"() <{level = 10 : i32, message = "bqs,bsd->bqd"}> : () -> ()
    %cst_35 = arith.constant dense<0.000000e+00> : vector<2x1x64xf32>
    %326 = tpu.matmul %325, %311, %cst_35 {dimension_numbers = #tpu.dot_dimension_numbers<[2], [1], [1], [2], [0, 0, 0, 1, 1, 2], [0], [0]>} : vector<2x1x8xf32>, vector<2x8x64xf32>, vector<2x1x64xf32> -> vector<2x1x64xf32>
    "tpu.trace_stop"() : () -> ()
    %327 = vector.shape_cast %326 : vector<2x1x64xf32> to vector<2x64xf32>
    %c0_36 = arith.constant 0 : index
    %c0_37 = arith.constant 0 : index
    %328 = vector.load %arg4[%c0_36, %c0_37] : memref<64x6xf32, #tpu.memory_space<vmem>>, vector<64x6xf32>
    %cst_38 = arith.constant dense<0.000000e+00> : vector<2x6xf32>
    %329 = tpu.matmul %327, %328, %cst_38 {dimension_numbers = #tpu.dot_dimension_numbers<[1], [0], [0], [1], [0, 0, 1, 1], [], []>} : vector<2x64xf32>, vector<64x6xf32>, vector<2x6xf32> -> vector<2x6xf32>
    %c0_39 = arith.constant 0 : index
    %c0_40 = arith.constant 0 : index
    %330 = vector.load %arg5[%c0_39, %c0_40] : memref<1x6xf32, #tpu.memory_space<vmem>>, vector<1x6xf32>
    %331 = vector.broadcast %330 : vector<1x6xf32> to vector<2x6xf32>
    %332 = arith.addf %329, %331 : vector<2x6xf32>
    %c0_41 = arith.constant 0 : index
    %c0_42 = arith.constant 0 : index
    %333 = vector.load %arg6[%c0_41, %c0_42] : memref<2x6xf32, #tpu.memory_space<vmem>>, vector<2x6xf32>
    tpu.vector_store %arg6[%c0_41, %c0_42], %332 {strides = array<i32>} : memref<2x6xf32, #tpu.memory_space<vmem>>, vector<2x6xf32>,
    return
  }
}

</mosaic_0001>

<llo_original>
// kernel: tpu_custom_call.1
$region0: #{tpu_custom_call.1}
  #allocation0 [shape = 'u32[]', space=smem, size = 0x4, offset = 0x4, fixed_abs, tag = 'smem constant byte address 0x4 - core index']
  #allocation1 [shape = 'u32[144,128]{1,0:T(1,128)}', space=vmem, size = 0x12000, scoped, tag = 'internal scratch']
  %s0 = inlined_call_operand.vmem [shape: f32[2,8,4], index: 0, kind: input, shape index: {}]
  %s1 = inlined_call_operand.vmem [shape: f32[4,256], index: 1, kind: input, shape index: {}]
  %s2 = inlined_call_operand.vmem [shape: f32[1,256], index: 2, kind: input, shape index: {}]
  %s3 = inlined_call_operand.hbm [shape: f32[64,256], index: 3, kind: input, shape index: {}]
  %s4 = inlined_call_operand.vmem [shape: f32[64,6], index: 4, kind: input, shape index: {}]
  %s5 = inlined_call_operand.vmem [shape: f32[1,6], index: 5, kind: input, shape index: {}]
  %s6 = inlined_call_operand.hbm [shape: f32[2,6], index: 6, kind: output, shape index: {0}]
  %s7 = inlined_call_operand.hbm [shape: f32[2,8,8], index: 7, kind: output, shape index: {1}]
  %8 = xla_tuple %s6, %s7
  %s9 = sld [smem:[#allocation0]]
  $region46: #{tpu_custom_call.1} parent=0
    _
  %s11 = ssub.s32 1, %s9
  %s12 = scalar_select 0, %s11, %s9
  $region1: #{tpu_custom_call.1} parent=0
    #allocation2 [shape = 'u8[65536]{0}', space=vmem, size = 0x10000, scoped, tag = 'input window, operand 3, single buffered']
    #allocation3 [shape = 's32[1]{0}', space=sflag, size = 0x4, scoped, tag = 'scoped memory for tpu_custom_call.1']
    #allocation4 [shape = 's32[1]{0}', space=sflag, size = 0x4, scoped, tag = 'scoped memory for tpu_custom_call.1']
    #allocation5 [shape = 'u8[1024]{0}', space=vmem, size = 0x400, scoped, tag = 'output window, operand 0, single buffered']
    #allocation6 [shape = 'u8[8192]{0}', space=vmem, size = 0x2000, scoped, tag = 'output window, operand 1, single buffered']
    #allocation7 [shape = 's32[1]{0}', space=sflag, size = 0x4, scoped, tag = 'scoped memory for tpu_custom_call.1']
    %13 = vsyncpa [#allocation3], 0
    %14 = vsyncpa [#allocation4], 0
    %15 = vsyncpa [#allocation7], 0
    // Predicated region
    $region2: #{tpu_custom_call.1} parent=1 // pred_check
      _
    $region3: #{tpu_custom_call.1} parent=1 // pred_check_branch
      %17 = sbr.rel (0) target = $region5
    $region4: #{tpu_custom_call.1} parent=1 // pred_region
      _
    $region5: #{tpu_custom_call.1} parent=1 // pred_fallthru
      _
    // Predicated region
    $region6: #{tpu_custom_call.1} parent=1 // pred_check
      _
    $region7: #{tpu_custom_call.1} parent=1 // pred_check_branch
      %19 = sbr.rel (0) target = $region9
    $region8: #{tpu_custom_call.1} parent=1 // pred_region
      _
    $region9: #{tpu_custom_call.1} parent=1 // pred_fallthru
      _
    // Predicated region
    $region10: #{tpu_custom_call.1} parent=1 // pred_check
      _
    $region11: #{tpu_custom_call.1} parent=1 // pred_check_branch
      %21 = sbr.rel (0) target = $region13
    $region12: #{tpu_custom_call.1} parent=1 // pred_region
      _
    $region13: #{tpu_custom_call.1} parent=1 // pred_fallthru
      _
    // Predicated region
    $region14: #{tpu_custom_call.1} parent=1 // pred_check
      _
    $region15: #{tpu_custom_call.1} parent=1 // pred_check_branch
      %23 = sbr.rel (0) target = $region17
    $region16: #{tpu_custom_call.1} parent=1 // pred_region
      %s25 = ssub.s32 2048, 2048
      %26 = vsyncadd [#allocation3], %s25
      %s27 = sshll.u32 [#allocation2], 4
      %s28 = int_to_ptr.vmem [resolvable:$true] %s27
      %33 = dma.hbm_to_vmem [thread:$0]  %s3, 2048, %s28, [#allocation3], 256, 256, 16
    $region17: #{tpu_custom_call.1} parent=1 // pred_fallthru
      _
    // Predicated region
    $region18: #{tpu_custom_call.1} parent=1 // pred_check
      _
    $region19: #{tpu_custom_call.1} parent=1 // pred_check_branch
      %35 = sbr.rel (0) target = $region21
    $region20: #{tpu_custom_call.1} parent=1 // pred_region
      _
    $region21: #{tpu_custom_call.1} parent=1 // pred_fallthru
      _
    // Predicated region
    $region22: #{tpu_custom_call.1} parent=1 // pred_check
      _
    $region23: #{tpu_custom_call.1} parent=1 // pred_check_branch
      %37 = sbr.rel (0) target = $region25
    $region24: #{tpu_custom_call.1} parent=1 // pred_region
      _
    $region25: #{tpu_custom_call.1} parent=1 // pred_fallthru
      _
    // Predicated region
    $region26: #{tpu_custom_call.1} parent=1 // pred_check
      _
    $region27: #{tpu_custom_call.1} parent=1 // pred_check_branch
      %39 = sbr.rel (0) target = $region29
    $region28: #{tpu_custom_call.1} parent=1 // pred_region
      %40 = dma.done [#allocation3], 2048
    $region29: #{tpu_custom_call.1} parent=1 // pred_fallthru
      _
    %v42 = vld [vmem:[%s1] sm:$0xff]
    %v44 = vcombine.high %v42, %v42
    %v46 = vpack.c.bf16 %v42, %v42
    %v47 = vpack.c.bf16 %v44, %v44
    %v48 = vld [vmem:[%s2] sm:$0x3]
    %v49 = vld [vmem:[%s0] sm:$0xff]
    %v50 = vpack.c.bf16 %v49, %v49
    %v52 = vlaneseq
    %v53 = vshrl.u32 %v52, 7
    %v54 = vsub.s32 0, %v53
    %v55 = vrot.slane %v48, %v54
    %v56 = vlaneseq
    %v57 = vshrl.u32 %v56, 7
    %v58 = vsub.s32 1, %v57
    %v59 = vrot.slane %v48, %v58
    %vm62 = vcmask 31744
    %v64 = vsel %vm62, %v50, 0
    %vm66 = vcmask 1041408
    %v68 = vsel %vm66, %v46, 0
    %v71 = vsel %vm66, %v47, 0
    %73 = vmatprep.subr.bf16.mxu0 %v71
    %74 = vmatpush1.bf16.msra.mxu0 %v68
    %75 = vmatprep.subr.bf16.mxu0 0
    %76 = vmatpush1.bf16.msra.mxu0 0
    %77 = vmatprep.subr.bf16.mxu0 0
    %78 = vmatpush1.bf16.msra.mxu0 0
    %79 = vmatprep.subr.bf16.mxu0 0
    %80 = vmatpush1.bf16.msra.mxu0 0
    %81 = vmatprep.subr.bf16.mxu0 0
    %82 = vmatpush1.bf16.msra.mxu0 0
    %83 = vmatprep.subr.bf16.mxu0 0
    %84 = vmatpush1.bf16.msra.mxu0 0
    %85 = vmatprep.subr.bf16.mxu0 0
    %86 = vmatpush1.bf16.msra.mxu0 0
    %87 = vmatprep.subr.bf16.mxu0 0
    %88 = vmatpush1.bf16.msra.mxu0 0
    %89 = vmatprep.subr.bf16.mxu0 0
    %90 = vmatpush1.bf16.msra.mxu0 0
    %91 = vmatprep.subr.bf16.mxu0 0
    %92 = vmatpush1.bf16.msra.mxu0 0
    %93 = vmatprep.subr.bf16.mxu0 0
    %94 = vmatpush1.bf16.msra.mxu0 0
    %95 = vmatprep.subr.bf16.mxu0 0
    %96 = vmatpush1.bf16.msra.mxu0 0
    %97 = vmatprep.subr.bf16.mxu0 0
    %98 = vmatpush1.bf16.msra.mxu0 0
    %99 = vmatprep.subr.bf16.mxu0 0
    %100 = vmatpush1.bf16.msra.mxu0 0
    %101 = vmatprep.subr.bf16.mxu0 0
    %102 = vmatpush1.bf16.msra.mxu0 0
    %103 = vmatprep.subr.bf16.mxu0 0
    %104 = vmatpush1.bf16.msra.mxu0 0
    %105 = vmatprep.mubr.bf16.mxu0 0
    %106 = vmatmul.mubr.bf16.gmra.mrb[0].mxu0 %v64
    %v107 = vpop.f32.mrb[0].mxu0
    %v108 = vadd.f32 %v55, %v107
    %v109 = vpop.f32.mrb[0].mxu0
    %v110 = vadd.f32 %v59, %v109
    %v111 = vpop.f32.mrb[0].mxu0
    %v112 = vpop.f32.mrb[0].mxu0
    %113 = vdwg.mxu0
    %s114 = scalar_lea.vmem %s0, 8
    %v115 = vld [vmem:[%s114] sm:$0xff]
    %v116 = vpack.c.bf16 %v115, %v115
    %v118 = vsel %vm62, %v116, 0
    %120 = vmatprep.subr.bf16.mxu0 %v71
    %121 = vmatpush1.bf16.msra.mxu0 %v68
    %122 = vmatprep.subr.bf16.mxu0 0
    %123 = vmatpush1.bf16.msra.mxu0 0
    %124 = vmatprep.subr.bf16.mxu0 0
    %125 = vmatpush1.bf16.msra.mxu0 0
    %126 = vmatprep.subr.bf16.mxu0 0
    %127 = vmatpush1.bf16.msra.mxu0 0
    %128 = vmatprep.subr.bf16.mxu0 0
    %129 = vmatpush1.bf16.msra.mxu0 0
    %130 = vmatprep.subr.bf16.mxu0 0
    %131 = vmatpush1.bf16.msra.mxu0 0
    %132 = vmatprep.subr.bf16.mxu0 0
    %133 = vmatpush1.bf16.msra.mxu0 0
    %134 = vmatprep.subr.bf16.mxu0 0
    %135 = vmatpush1.bf16.msra.mxu0 0
    %136 = vmatprep.subr.bf16.mxu0 0
    %137 = vmatpush1.bf16.msra.mxu0 0
    %138 = vmatprep.subr.bf16.mxu0 0
    %139 = vmatpush1.bf16.msra.mxu0 0
    %140 = vmatprep.subr.bf16.mxu0 0
    %141 = vmatpush1.bf16.msra.mxu0 0
    %142 = vmatprep.subr.bf16.mxu0 0
    %143 = vmatpush1.bf16.msra.mxu0 0
    %144 = vmatprep.subr.bf16.mxu0 0
    %145 = vmatpush1.bf16.msra.mxu0 0
    %146 = vmatprep.subr.bf16.mxu0 0
    %147 = vmatpush1.bf16.msra.mxu0 0
    %148 = vmatprep.subr.bf16.mxu0 0
    %149 = vmatpush1.bf16.msra.mxu0 0
    %150 = vmatprep.subr.bf16.mxu0 0
    %151 = vmatpush1.bf16.msra.mxu0 0
    %152 = vmatprep.mubr.bf16.mxu0 0
    %153 = vmatmul.mubr.bf16.gmra.mrb[0].mxu0 %v118
    %v154 = vpop.f32.mrb[0].mxu0
    %v155 = vadd.f32 %v55, %v154
    %v156 = vpop.f32.mrb[0].mxu0
    %v157 = vadd.f32 %v59, %v156
    %v158 = vpop.f32.mrb[0].mxu0
    %v159 = vpop.f32.mrb[0].mxu0
    %160 = vdwg.mxu0
    %v162 = vrot.slane %v110, 7
    %v165 = vrot.slane %v157, 7
    %v167 = vrot.slane %v155, 7
    %v168 = vrot.slane %v165, 7
    %vm171 = vcmask 1040384
    %v172 = vsel %vm171, %v108, %v167
    %v173 = vsel %vm171, %v162, %v168
    %v174 = vrot.slane %v110, 5
    %v175 = vrot.slane %v157, 5
    %v178 = vrot.slane %v108, 1
    %v179 = vrot.slane %v174, 1
    %v182 = vsel %vm171, %v178, %v155
    %v183 = vsel %vm171, %v179, %v175
    %v184 = vrot.slane %v110, 3
    %v185 = vrot.slane %v157, 3
    %v186 = vrot.slane %v108, 2
    %v187 = vrot.slane %v184, 2
    %v190 = vrot.slane %v155, 1
    %v191 = vrot.slane %v185, 1
    %v194 = vsel %vm171, %v186, %v190
    %v195 = vsel %vm171, %v187, %v191
    %v196 = vrot.slane %v110, 1
    %v197 = vrot.slane %v157, 1
    %v198 = vrot.slane %v108, 3
    %v199 = vrot.slane %v196, 3
    %v202 = vrot.slane %v155, 2
    %v203 = vrot.slane %v197, 2
    %v206 = vsel %vm171, %v198, %v202
    %v207 = vsel %vm171, %v199, %v203
    %v208 = vrot.slane %v108, 4
    %v209 = vrot.slane %v162, 4
    %v212 = vrot.slane %v155, 3
    %v213 = vrot.slane %v165, 3
    %v216 = vsel %vm171, %v208, %v212
    %v217 = vsel %vm171, %v209, %v213
    %v218 = vrot.slane %v108, 5
    %v219 = vrot.slane %v174, 5
    %v222 = vrot.slane %v155, 4
    %v223 = vrot.slane %v175, 4
    %v226 = vsel %vm171, %v218, %v222
    %v227 = vsel %vm171, %v219, %v223
    %v228 = vrot.slane %v108, 6
    %v229 = vrot.slane %v184, 6
    %v232 = vrot.slane %v155, 5
    %v233 = vrot.slane %v185, 5
    %v236 = vsel %vm171, %v228, %v232
    %v237 = vsel %vm171, %v229, %v233
    %v238 = vrot.slane %v108, 7
    %v239 = vrot.slane %v196, 7
    %v242 = vrot.slane %v155, 6
    %v243 = vrot.slane %v197, 6
    %v246 = vsel %vm171, %v238, %v242
    %v247 = vsel %vm171, %v239, %v243
    %v248 = vld [vmem:[#allocation2] sm:$0xff]
    %v249 = vld [vmem:[#allocation2 + $0x8] sm:$0xff]
    %v250 = vld [vmem:[#allocation2 + $0x10] sm:$0xff]
    %v251 = vld [vmem:[#allocation2 + $0x18] sm:$0xff]
    %v252 = vld [vmem:[#allocation2 + $0x20] sm:$0xff]
    %v253 = vld [vmem:[#allocation2 + $0x28] sm:$0xff]
    %v254 = vld [vmem:[#allocation2 + $0x30] sm:$0xff]
    %v255 = vld [vmem:[#allocation2 + $0x38] sm:$0xff]
    %v256 = vld [vmem:[#allocation2 + $0x40] sm:$0xff]
    %v257 = vld [vmem:[#allocation2 + $0x48] sm:$0xff]
    %v258 = vld [vmem:[#allocation2 + $0x50] sm:$0xff]
    %v259 = vld [vmem:[#allocation2 + $0x58] sm:$0xff]
    %v260 = vld [vmem:[#allocation2 + $0x60] sm:$0xff]
    %v261 = vld [vmem:[#allocation2 + $0x68] sm:$0xff]
    %v262 = vld [vmem:[#allocation2 + $0x70] sm:$0xff]
    %v263 = vld [vmem:[#allocation2 + $0x78] sm:$0xff]
    %v264 = vpack.c.bf16 %v250, %v248
    %v265 = vpack.c.bf16 %v251, %v249
    %v266 = vpack.c.bf16 %v254, %v252
    %v267 = vpack.c.bf16 %v255, %v253
    %v268 = vpack.c.bf16 %v258, %v256
    %v269 = vpack.c.bf16 %v259, %v257
    %v270 = vpack.c.bf16 %v262, %v260
    %v271 = vpack.c.bf16 %v263, %v261
    %v272 = vxor.u32 %v172, 2147483648
    %v273 = vxor.u32 %v173, 2147483648
    %v274 = vmul.f32 %v272, 1.442695
    %v275 = vpow.pop %v274
    %v276 = vmul.f32 %v273, 1.442695
    %v277 = vpow.pop %v276
    %v278 = vadd.f32 %v275, 1.0
    %v279 = vadd.f32 %v277, 1.0
    %v280 = vrcp.pop %v278
    %v281 = vmul.f32 1.0, %v280
    %v282 = vrcp.pop %v279
    %v283 = vmul.f32 1.0, %v282
    %v284 = vtanh.pop %v172
    %v285 = vtanh.pop %v173
    %v286 = vmul.f32 %v281, 0.0
    %288 = vrot.lane.b32.xlu0 %v284, 64
    %v289 = vpop.permute.xlu0 %288
    %v291 = vmul.f32 %v281, %v289
    %293 = vrot.lane.b32.xlu0 %v291, 32
    %v294 = vpop.permute.xlu0 %293
    %v296 = vadd.f32 %v286, %v294
    %v297 = vtanh.pop %v296
    %299 = vrot.lane.b32.xlu0 %v297, 64
    %v300 = vpop.permute.xlu0 %299
    %v302 = vmul.f32 %v281, %v300
    %v303 = vmul.f32 %v283, 0.0
    %305 = vrot.lane.b32.xlu0 %v285, 64
    %v306 = vpop.permute.xlu0 %305
    %v308 = vmul.f32 %v283, %v306
    %310 = vrot.lane.b32.xlu0 %v308, 32
    %v311 = vpop.permute.xlu0 %310
    %v313 = vadd.f32 %v303, %v311
    %v314 = vtanh.pop %v313
    %316 = vrot.lane.b32.xlu0 %v314, 64
    %v317 = vpop.permute.xlu0 %316
    %v319 = vmul.f32 %v283, %v317
    %321 = vrot.lane.b32.xlu0 %v302, 32
    %v322 = vpop.permute.xlu0 %321
    %325 = vrot.lane.b32.xlu0 %v319, 64
    %v326 = vpop.permute.xlu0 %325
    %vm328 = vcmask 261120
    %v329 = vsel %vm328, %v322, %v326
    %v330 = vpack.c.bf16 %v329, %v329
    %vm331 = vcmask 523264
    %v333 = vsel %vm331, %v330, 0
    %335 = vmatprep.subr.bf16.mxu0 %v265
    %336 = vmatpush1.bf16.msra.mxu0 %v264
    %337 = vmatprep.subr.bf16.mxu0 %v267
    %338 = vmatpush1.bf16.msra.mxu0 %v266
    %339 = vmatprep.subr.bf16.mxu0 %v269
    %340 = vmatpush1.bf16.msra.mxu0 %v268
    %341 = vmatprep.subr.bf16.mxu0 %v271
    %342 = vmatpush1.bf16.msra.mxu0 %v270
    %343 = vmatprep.subr.bf16.mxu0 0
    %344 = vmatpush1.bf16.msra.mxu0 0
    %345 = vmatprep.subr.bf16.mxu0 0
    %346 = vmatpush1.bf16.msra.mxu0 0
    %347 = vmatprep.subr.bf16.mxu0 0
    %348 = vmatpush1.bf16.msra.mxu0 0
    %349 = vmatprep.subr.bf16.mxu0 0
    %350 = vmatpush1.bf16.msra.mxu0 0
    %351 = vmatprep.subr.bf16.mxu0 0
    %352 = vmatpush1.bf16.msra.mxu0 0
    %353 = vmatprep.subr.bf16.mxu0 0
    %354 = vmatpush1.bf16.msra.mxu0 0
    %355 = vmatprep.subr.bf16.mxu0 0
    %356 = vmatpush1.bf16.msra.mxu0 0
    %357 = vmatprep.subr.bf16.mxu0 0
    %358 = vmatpush1.bf16.msra.mxu0 0
    %359 = vmatprep.subr.bf16.mxu0 0
    %360 = vmatpush1.bf16.msra.mxu0 0
    %361 = vmatprep.subr.bf16.mxu0 0
    %362 = vmatpush1.bf16.msra.mxu0 0
    %363 = vmatprep.subr.bf16.mxu0 0
    %364 = vmatpush1.bf16.msra.mxu0 0
    %365 = vmatprep.subr.bf16.mxu0 0
    %366 = vmatpush1.bf16.msra.mxu0 0
    %367 = vmatprep.mubr.bf16.mxu0 0
    %368 = vmatmul.mubr.bf16.gmra.mrb[0].mxu0 %v333
    %v369 = vpop.f32.mrb[0].mxu0
    %v370 = vadd.f32 0.0, %v369
    %v371 = vpop.f32.mrb[0].mxu0
    %v372 = vadd.f32 0.0, %v371
    %v373 = vpop.f32.mrb[0].mxu0
    %v374 = vpop.f32.mrb[0].mxu0
    %375 = vdwg.mxu0
    %v376 = vadd.f32 %v182, %v370
    %v377 = vadd.f32 %v183, %v372
    %v378 = vxor.u32 %v376, 2147483648
    %v379 = vxor.u32 %v377, 2147483648
    %v380 = vmul.f32 %v378, 1.442695
    %v381 = vpow.pop %v380
    %v382 = vmul.f32 %v379, 1.442695
    %v383 = vpow.pop %v382
    %v384 = vadd.f32 %v381, 1.0
    %v385 = vadd.f32 %v383, 1.0
    %v386 = vrcp.pop %v384
    %v387 = vmul.f32 1.0, %v386
    %v388 = vrcp.pop %v385
    %v389 = vmul.f32 1.0, %v388
    %v390 = vtanh.pop %v376
    %v391 = vtanh.pop %v377
    %v392 = vmul.f32 %v387, %v296
    %394 = vrot.lane.b32.xlu0 %v390, 64
    %v395 = vpop.permute.xlu0 %394
    %v397 = vmul.f32 %v387, %v395
    %399 = vrot.lane.b32.xlu0 %v397, 32
    %v400 = vpop.permute.xlu0 %399
    %v402 = vadd.f32 %v392, %v400
    %v403 = vtanh.pop %v402
    %405 = vrot.lane.b32.xlu0 %v403, 64
    %v406 = vpop.permute.xlu0 %405
    %v408 = vmul.f32 %v387, %v406
    %v409 = vmul.f32 %v389, %v313
    %411 = vrot.lane.b32.xlu0 %v391, 64
    %v412 = vpop.permute.xlu0 %411
    %v414 = vmul.f32 %v389, %v412
    %416 = vrot.lane.b32.xlu0 %v414, 32
    %v417 = vpop.permute.xlu0 %416
    %v419 = vadd.f32 %v409, %v417
    %v420 = vtanh.pop %v419
    %422 = vrot.lane.b32.xlu0 %v420, 64
    %v423 = vpop.permute.xlu0 %422
    %v425 = vmul.f32 %v389, %v423
    %427 = vrot.lane.b32.xlu0 %v408, 32
    %v428 = vpop.permute.xlu0 %427
    %431 = vrot.lane.b32.xlu0 %v425, 64
    %v432 = vpop.permute.xlu0 %431
    %v434 = vsel %vm328, %v428, %v432
    %v435 = vpack.c.bf16 %v434, %v434
    %v437 = vsel %vm331, %v435, 0
    %439 = vmatprep.subr.bf16.mxu0 %v265
    %440 = vmatpush1.bf16.msra.mxu0 %v264
    %441 = vmatprep.subr.bf16.mxu0 %v267
    %442 = vmatpush1.bf16.msra.mxu0 %v266
    %443 = vmatprep.subr.bf16.mxu0 %v269
    %444 = vmatpush1.bf16.msra.mxu0 %v268
    %445 = vmatprep.subr.bf16.mxu0 %v271
    %446 = vmatpush1.bf16.msra.mxu0 %v270
    %447 = vmatprep.subr.bf16.mxu0 0
    %448 = vmatpush1.bf16.msra.mxu0 0
    %449 = vmatprep.subr.bf16.mxu0 0
    %450 = vmatpush1.bf16.msra.mxu0 0
    %451 = vmatprep.subr.bf16.mxu0 0
    %452 = vmatpush1.bf16.msra.mxu0 0
    %453 = vmatprep.subr.bf16.mxu0 0
    %454 = vmatpush1.bf16.msra.mxu0 0
    %455 = vmatprep.subr.bf16.mxu0 0
    %456 = vmatpush1.bf16.msra.mxu0 0
    %457 = vmatprep.subr.bf16.mxu0 0
    %458 = vmatpush1.bf16.msra.mxu0 0
    %459 = vmatprep.subr.bf16.mxu0 0
    %460 = vmatpush1.bf16.msra.mxu0 0
    %461 = vmatprep.subr.bf16.mxu0 0
    %462 = vmatpush1.bf16.msra.mxu0 0
    %463 = vmatprep.subr.bf16.mxu0 0
    %464 = vmatpush1.bf16.msra.mxu0 0
    %465 = vmatprep.subr.bf16.mxu0 0
    %466 = vmatpush1.bf16.msra.mxu0 0
    %467 = vmatprep.subr.bf16.mxu0 0
    %468 = vmatpush1.bf16.msra.mxu0 0
    %469 = vmatprep.subr.bf16.mxu0 0
    %470 = vmatpush1.bf16.msra.mxu0 0
    %471 = vmatprep.mubr.bf16.mxu0 0
    %472 = vmatmul.mubr.bf16.gmra.mrb[0].mxu0 %v437
    %v473 = vpop.f32.mrb[0].mxu0
    %v474 = vadd.f32 0.0, %v473
    %v475 = vpop.f32.mrb[0].mxu0
    %v476 = vadd.f32 0.0, %v475
    %v477 = vpop.f32.mrb[0].mxu0
    %v478 = vpop.f32.mrb[0].mxu0
    %479 = vdwg.mxu0
    %v480 = vadd.f32 %v194, %v474
    %v481 = vadd.f32 %v195, %v476
    %v482 = vxor.u32 %v480, 2147483648
    %v483 = vxor.u32 %v481, 2147483648
    %v484 = vmul.f32 %v482, 1.442695
    %v485 = vpow.pop %v484
    %v486 = vmul.f32 %v483, 1.442695
    %v487 = vpow.pop %v486
    %v488 = vadd.f32 %v485, 1.0
    %v489 = vadd.f32 %v487, 1.0
    %v490 = vrcp.pop %v488
    %v491 = vmul.f32 1.0, %v490
    %v492 = vrcp.pop %v489
    %v493 = vmul.f32 1.0, %v492
    %v494 = vtanh.pop %v480
    %v495 = vtanh.pop %v481
    %v496 = vmul.f32 %v491, %v402
    %498 = vrot.lane.b32.xlu0 %v494, 64
    %v499 = vpop.permute.xlu0 %498
    %v501 = vmul.f32 %v491, %v499
    %503 = vrot.lane.b32.xlu0 %v501, 32
    %v504 = vpop.permute.xlu0 %503
    %v506 = vadd.f32 %v496, %v504
    %v507 = vtanh.pop %v506
    %509 = vrot.lane.b32.xlu0 %v507, 64
    %v510 = vpop.permute.xlu0 %509
    %v512 = vmul.f32 %v491, %v510
    %v513 = vmul.f32 %v493, %v419
    %515 = vrot.lane.b32.xlu0 %v495, 64
    %v516 = vpop.permute.xlu0 %515
    %v518 = vmul.f32 %v493, %v516
    %520 = vrot.lane.b32.xlu0 %v518, 32
    %v521 = vpop.permute.xlu0 %520
    %v523 = vadd.f32 %v513, %v521
    %v524 = vtanh.pop %v523
    %526 = vrot.lane.b32.xlu0 %v524, 64
    %v527 = vpop.permute.xlu0 %526
    %v529 = vmul.f32 %v493, %v527
    %531 = vrot.lane.b32.xlu0 %v512, 32
    %v532 = vpop.permute.xlu0 %531
    %535 = vrot.lane.b32.xlu0 %v529, 64
    %v536 = vpop.permute.xlu0 %535
    %v538 = vsel %vm328, %v532, %v536
    %v539 = vpack.c.bf16 %v538, %v538
    %v541 = vsel %vm331, %v539, 0
    %543 = vmatprep.subr.bf16.mxu0 %v265
    %544 = vmatpush1.bf16.msra.mxu0 %v264
    %545 = vmatprep.subr.bf16.mxu0 %v267
    %546 = vmatpush1.bf16.msra.mxu0 %v266
    %547 = vmatprep.subr.bf16.mxu0 %v269
    %548 = vmatpush1.bf16.msra.mxu0 %v268
    %549 = vmatprep.subr.bf16.mxu0 %v271
    %550 = vmatpush1.bf16.msra.mxu0 %v270
    %551 = vmatprep.subr.bf16.mxu0 0
    %552 = vmatpush1.bf16.msra.mxu0 0
    %553 = vmatprep.subr.bf16.mxu0 0
    %554 = vmatpush1.bf16.msra.mxu0 0
    %555 = vmatprep.subr.bf16.mxu0 0
    %556 = vmatpush1.bf16.msra.mxu0 0
    %557 = vmatprep.subr.bf16.mxu0 0
    %558 = vmatpush1.bf16.msra.mxu0 0
    %559 = vmatprep.subr.bf16.mxu0 0
    %560 = vmatpush1.bf16.msra.mxu0 0
    %561 = vmatprep.subr.bf16.mxu0 0
    %562 = vmatpush1.bf16.msra.mxu0 0
    %563 = vmatprep.subr.bf16.mxu0 0
    %564 = vmatpush1.bf16.msra.mxu0 0
    %565 = vmatprep.subr.bf16.mxu0 0
    %566 = vmatpush1.bf16.msra.mxu0 0
    %567 = vmatprep.subr.bf16.mxu0 0
    %568 = vmatpush1.bf16.msra.mxu0 0
    %569 = vmatprep.subr.bf16.mxu0 0
    %570 = vmatpush1.bf16.msra.mxu0 0
    %571 = vmatprep.subr.bf16.mxu0 0
    %572 = vmatpush1.bf16.msra.mxu0 0
    %573 = vmatprep.subr.bf16.mxu0 0
    %574 = vmatpush1.bf16.msra.mxu0 0
    %575 = vmatprep.mubr.bf16.mxu0 0
    %576 = vmatmul.mubr.bf16.gmra.mrb[0].mxu0 %v541
    %v577 = vpop.f32.mrb[0].mxu0
    %v578 = vadd.f32 0.0, %v577
    %v579 = vpop.f32.mrb[0].mxu0
    %v580 = vadd.f32 0.0, %v579
    %v581 = vpop.f32.mrb[0].mxu0
    %v582 = vpop.f32.mrb[0].mxu0
    %583 = vdwg.mxu0
    %v584 = vadd.f32 %v206, %v578
    %v585 = vadd.f32 %v207, %v580
    %v586 = vxor.u32 %v584, 2147483648
    %v587 = vxor.u32 %v585, 2147483648
    %v588 = vmul.f32 %v586, 1.442695
    %v589 = vpow.pop %v588
    %v590 = vmul.f32 %v587, 1.442695
    %v591 = vpow.pop %v590
    %v592 = vadd.f32 %v589, 1.0
    %v593 = vadd.f32 %v591, 1.0
    %v594 = vrcp.pop %v592
    %v595 = vmul.f32 1.0, %v594
    %v596 = vrcp.pop %v593
    %v597 = vmul.f32 1.0, %v596
    %v598 = vtanh.pop %v584
    %v599 = vtanh.pop %v585
    %v600 = vmul.f32 %v595, %v506
    %602 = vrot.lane.b32.xlu0 %v598, 64
    %v603 = vpop.permute.xlu0 %602
    %v605 = vmul.f32 %v595, %v603
    %607 = vrot.lane.b32.xlu0 %v605, 32
    %v608 = vpop.permute.xlu0 %607
    %v610 = vadd.f32 %v600, %v608
    %v611 = vtanh.pop %v610
    %613 = vrot.lane.b32.xlu0 %v611, 64
    %v614 = vpop.permute.xlu0 %613
    %v616 = vmul.f32 %v595, %v614
    %v617 = vmul.f32 %v597, %v523
    %619 = vrot.lane.b32.xlu0 %v599, 64
    %v620 = vpop.permute.xlu0 %619
    %v622 = vmul.f32 %v597, %v620
    %624 = vrot.lane.b32.xlu0 %v622, 32
    %v625 = vpop.permute.xlu0 %624
    %v627 = vadd.f32 %v617, %v625
    %v628 = vtanh.pop %v627
    %630 = vrot.lane.b32.xlu0 %v628, 64
    %v631 = vpop.permute.xlu0 %630
    %v633 = vmul.f32 %v597, %v631
    %635 = vrot.lane.b32.xlu0 %v616, 32
    %v636 = vpop.permute.xlu0 %635
    %639 = vrot.lane.b32.xlu0 %v633, 64
    %v640 = vpop.permute.xlu0 %639
    %v642 = vsel %vm328, %v636, %v640
    %v643 = vpack.c.bf16 %v642, %v642
    %v645 = vsel %vm331, %v643, 0
    %647 = vmatprep.subr.bf16.mxu0 %v265
    %648 = vmatpush1.bf16.msra.mxu0 %v264
    %649 = vmatprep.subr.bf16.mxu0 %v267
    %650 = vmatpush1.bf16.msra.mxu0 %v266
    %651 = vmatprep.subr.bf16.mxu0 %v269
    %652 = vmatpush1.bf16.msra.mxu0 %v268
    %653 = vmatprep.subr.bf16.mxu0 %v271
    %654 = vmatpush1.bf16.msra.mxu0 %v270
    %655 = vmatprep.subr.bf16.mxu0 0
    %656 = vmatpush1.bf16.msra.mxu0 0
    %657 = vmatprep.subr.bf16.mxu0 0
    %658 = vmatpush1.bf16.msra.mxu0 0
    %659 = vmatprep.subr.bf16.mxu0 0
    %660 = vmatpush1.bf16.msra.mxu0 0
    %661 = vmatprep.subr.bf16.mxu0 0
    %662 = vmatpush1.bf16.msra.mxu0 0
    %663 = vmatprep.subr.bf16.mxu0 0
    %664 = vmatpush1.bf16.msra.mxu0 0
    %665 = vmatprep.subr.bf16.mxu0 0
    %666 = vmatpush1.bf16.msra.mxu0 0
    %667 = vmatprep.subr.bf16.mxu0 0
    %668 = vmatpush1.bf16.msra.mxu0 0
    %669 = vmatprep.subr.bf16.mxu0 0
    %670 = vmatpush1.bf16.msra.mxu0 0
    %671 = vmatprep.subr.bf16.mxu0 0
    %672 = vmatpush1.bf16.msra.mxu0 0
    %673 = vmatprep.subr.bf16.mxu0 0
    %674 = vmatpush1.bf16.msra.mxu0 0
    %675 = vmatprep.subr.bf16.mxu0 0
    %676 = vmatpush1.bf16.msra.mxu0 0
    %677 = vmatprep.subr.bf16.mxu0 0
    %678 = vmatpush1.bf16.msra.mxu0 0
    %679 = vmatprep.mubr.bf16.mxu0 0
    %680 = vmatmul.mubr.bf16.gmra.mrb[0].mxu0 %v645
    %v681 = vpop.f32.mrb[0].mxu0
    %v682 = vadd.f32 0.0, %v681
    %v683 = vpop.f32.mrb[0].mxu0
    %v684 = vadd.f32 0.0, %v683
    %v685 = vpop.f32.mrb[0].mxu0
    %v686 = vpop.f32.mrb[0].mxu0
    %687 = vdwg.mxu0
    %v688 = vadd.f32 %v216, %v682
    %v689 = vadd.f32 %v217, %v684
    %v690 = vxor.u32 %v688, 2147483648
    %v691 = vxor.u32 %v689, 2147483648
    %v692 = vmul.f32 %v690, 1.442695
    %v693 = vpow.pop %v692
    %v694 = vmul.f32 %v691, 1.442695
    %v695 = vpow.pop %v694
    %v696 = vadd.f32 %v693, 1.0
    %v697 = vadd.f32 %v695, 1.0
    %v698 = vrcp.pop %v696
    %v699 = vmul.f32 1.0, %v698
    %v700 = vrcp.pop %v697
    %v701 = vmul.f32 1.0, %v700
    %v702 = vtanh.pop %v688
    %v703 = vtanh.pop %v689
    %v704 = vmul.f32 %v699, %v610
    %706 = vrot.lane.b32.xlu0 %v702, 64
    %v707 = vpop.permute.xlu0 %706
    %v709 = vmul.f32 %v699, %v707
    %711 = vrot.lane.b32.xlu0 %v709, 32
    %v712 = vpop.permute.xlu0 %711
    %v714 = vadd.f32 %v704, %v712
    %v715 = vtanh.pop %v714
    %717 = vrot.lane.b32.xlu0 %v715, 64
    %v718 = vpop.permute.xlu0 %717
    %v720 = vmul.f32 %v699, %v718
    %v721 = vmul.f32 %v701, %v627
    %723 = vrot.lane.b32.xlu0 %v703, 64
    %v724 = vpop.permute.xlu0 %723
    %v726 = vmul.f32 %v701, %v724
    %728 = vrot.lane.b32.xlu0 %v726, 32
    %v729 = vpop.permute.xlu0 %728
    %v731 = vadd.f32 %v721, %v729
    %v732 = vtanh.pop %v731
    %734 = vrot.lane.b32.xlu0 %v732, 64
    %v735 = vpop.permute.xlu0 %734
    %v737 = vmul.f32 %v701, %v735
    %739 = vrot.lane.b32.xlu0 %v720, 32
    %v740 = vpop.permute.xlu0 %739
    %743 = vrot.lane.b32.xlu0 %v737, 64
    %v744 = vpop.permute.xlu0 %743
    %v746 = vsel %vm328, %v740, %v744
    %v747 = vpack.c.bf16 %v746, %v746
    %v749 = vsel %vm331, %v747, 0
    %751 = vmatprep.subr.bf16.mxu0 %v265
    %752 = vmatpush1.bf16.msra.mxu0 %v264
    %753 = vmatprep.subr.bf16.mxu0 %v267
    %754 = vmatpush1.bf16.msra.mxu0 %v266
    %755 = vmatprep.subr.bf16.mxu0 %v269
    %756 = vmatpush1.bf16.msra.mxu0 %v268
    %757 = vmatprep.subr.bf16.mxu0 %v271
    %758 = vmatpush1.bf16.msra.mxu0 %v270
    %759 = vmatprep.subr.bf16.mxu0 0
    %760 = vmatpush1.bf16.msra.mxu0 0
    %761 = vmatprep.subr.bf16.mxu0 0
    %762 = vmatpush1.bf16.msra.mxu0 0
    %763 = vmatprep.subr.bf16.mxu0 0
    %764 = vmatpush1.bf16.msra.mxu0 0
    %765 = vmatprep.subr.bf16.mxu0 0
    %766 = vmatpush1.bf16.msra.mxu0 0
    %767 = vmatprep.subr.bf16.mxu0 0
    %768 = vmatpush1.bf16.msra.mxu0 0
    %769 = vmatprep.subr.bf16.mxu0 0
    %770 = vmatpush1.bf16.msra.mxu0 0
    %771 = vmatprep.subr.bf16.mxu0 0
    %772 = vmatpush1.bf16.msra.mxu0 0
    %773 = vmatprep.subr.bf16.mxu0 0
    %774 = vmatpush1.bf16.msra.mxu0 0
    %775 = vmatprep.subr.bf16.mxu0 0
    %776 = vmatpush1.bf16.msra.mxu0 0
    %777 = vmatprep.subr.bf16.mxu0 0
    %778 = vmatpush1.bf16.msra.mxu0 0
    %779 = vmatprep.subr.bf16.mxu0 0
    %780 = vmatpush1.bf16.msra.mxu0 0
    %781 = vmatprep.subr.bf16.mxu0 0
    %782 = vmatpush1.bf16.msra.mxu0 0
    %783 = vmatprep.mubr.bf16.mxu0 0
    %784 = vmatmul.mubr.bf16.gmra.mrb[0].mxu0 %v749
    %v785 = vpop.f32.mrb[0].mxu0
    %v786 = vadd.f32 0.0, %v785
    %v787 = vpop.f32.mrb[0].mxu0
    %v788 = vadd.f32 0.0, %v787
    %v789 = vpop.f32.mrb[0].mxu0
    %v790 = vpop.f32.mrb[0].mxu0
    %791 = vdwg.mxu0
    %v792 = vadd.f32 %v226, %v786
    %v793 = vadd.f32 %v227, %v788
    %v794 = vxor.u32 %v792, 2147483648
    %v795 = vxor.u32 %v793, 2147483648
    %v796 = vmul.f32 %v794, 1.442695
    %v797 = vpow.pop %v796
    %v798 = vmul.f32 %v795, 1.442695
    %v799 = vpow.pop %v798
    %v800 = vadd.f32 %v797, 1.0
    %v801 = vadd.f32 %v799, 1.0
    %v802 = vrcp.pop %v800
    %v803 = vmul.f32 1.0, %v802
    %v804 = vrcp.pop %v801
    %v805 = vmul.f32 1.0, %v804
    %v806 = vtanh.pop %v792
    %v807 = vtanh.pop %v793
    %v808 = vmul.f32 %v803, %v714
    %810 = vrot.lane.b32.xlu0 %v806, 64
    %v811 = vpop.permute.xlu0 %810
    %v813 = vmul.f32 %v803, %v811
    %815 = vrot.lane.b32.xlu0 %v813, 32
    %v816 = vpop.permute.xlu0 %815
    %v818 = vadd.f32 %v808, %v816
    %v819 = vtanh.pop %v818
    %821 = vrot.lane.b32.xlu0 %v819, 64
    %v822 = vpop.permute.xlu0 %821
    %v824 = vmul.f32 %v803, %v822
    %v825 = vmul.f32 %v805, %v731
    %827 = vrot.lane.b32.xlu0 %v807, 64
    %v828 = vpop.permute.xlu0 %827
    %v830 = vmul.f32 %v805, %v828
    %832 = vrot.lane.b32.xlu0 %v830, 32
    %v833 = vpop.permute.xlu0 %832
    %v835 = vadd.f32 %v825, %v833
    %v836 = vtanh.pop %v835
    %838 = vrot.lane.b32.xlu0 %v836, 64
    %v839 = vpop.permute.xlu0 %838
    %v841 = vmul.f32 %v805, %v839
    %843 = vrot.lane.b32.xlu0 %v824, 32
    %v844 = vpop.permute.xlu0 %843
    %847 = vrot.lane.b32.xlu0 %v841, 64
    %v848 = vpop.permute.xlu0 %847
    %v850 = vsel %vm328, %v844, %v848
    %v851 = vpack.c.bf16 %v850, %v850
    %v853 = vsel %vm331, %v851, 0
    %855 = vmatprep.subr.bf16.mxu0 %v265
    %856 = vmatpush1.bf16.msra.mxu0 %v264
    %857 = vmatprep.subr.bf16.mxu0 %v267
    %858 = vmatpush1.bf16.msra.mxu0 %v266
    %859 = vmatprep.subr.bf16.mxu0 %v269
    %860 = vmatpush1.bf16.msra.mxu0 %v268
    %861 = vmatprep.subr.bf16.mxu0 %v271
    %862 = vmatpush1.bf16.msra.mxu0 %v270
    %863 = vmatprep.subr.bf16.mxu0 0
    %864 = vmatpush1.bf16.msra.mxu0 0
    %865 = vmatprep.subr.bf16.mxu0 0
    %866 = vmatpush1.bf16.msra.mxu0 0
    %867 = vmatprep.subr.bf16.mxu0 0
    %868 = vmatpush1.bf16.msra.mxu0 0
    %869 = vmatprep.subr.bf16.mxu0 0
    %870 = vmatpush1.bf16.msra.mxu0 0
    %871 = vmatprep.subr.bf16.mxu0 0
    %872 = vmatpush1.bf16.msra.mxu0 0
    %873 = vmatprep.subr.bf16.mxu0 0
    %874 = vmatpush1.bf16.msra.mxu0 0
    %875 = vmatprep.subr.bf16.mxu0 0
    %876 = vmatpush1.bf16.msra.mxu0 0
    %877 = vmatprep.subr.bf16.mxu0 0
    %878 = vmatpush1.bf16.msra.mxu0 0
    %879 = vmatprep.subr.bf16.mxu0 0
    %880 = vmatpush1.bf16.msra.mxu0 0
    %881 = vmatprep.subr.bf16.mxu0 0
    %882 = vmatpush1.bf16.msra.mxu0 0
    %883 = vmatprep.subr.bf16.mxu0 0
    %884 = vmatpush1.bf16.msra.mxu0 0
    %885 = vmatprep.subr.bf16.mxu0 0
    %886 = vmatpush1.bf16.msra.mxu0 0
    %887 = vmatprep.mubr.bf16.mxu0 0
    %888 = vmatmul.mubr.bf16.gmra.mrb[0].mxu0 %v853
    %v889 = vpop.f32.mrb[0].mxu0
    %v890 = vadd.f32 0.0, %v889
    %v891 = vpop.f32.mrb[0].mxu0
    %v892 = vadd.f32 0.0, %v891
    %v893 = vpop.f32.mrb[0].mxu0
    %v894 = vpop.f32.mrb[0].mxu0
    %895 = vdwg.mxu0
    %v896 = vadd.f32 %v236, %v890
    %v897 = vadd.f32 %v237, %v892
    %v898 = vxor.u32 %v896, 2147483648
    %v899 = vxor.u32 %v897, 2147483648
    %v900 = vmul.f32 %v898, 1.442695
    %v901 = vpow.pop %v900
    %v902 = vmul.f32 %v899, 1.442695
    %v903 = vpow.pop %v902
    %v904 = vadd.f32 %v901, 1.0
    %v905 = vadd.f32 %v903, 1.0
    %v906 = vrcp.pop %v904
    %v907 = vmul.f32 1.0, %v906
    %v908 = vrcp.pop %v905
    %v909 = vmul.f32 1.0, %v908
    %v910 = vtanh.pop %v896
    %v911 = vtanh.pop %v897
    %v912 = vmul.f32 %v907, %v818
    %914 = vrot.lane.b32.xlu0 %v910, 64
    %v915 = vpop.permute.xlu0 %914
    %v917 = vmul.f32 %v907, %v915
    %919 = vrot.lane.b32.xlu0 %v917, 32
    %v920 = vpop.permute.xlu0 %919
    %v922 = vadd.f32 %v912, %v920
    %v923 = vtanh.pop %v922
    %925 = vrot.lane.b32.xlu0 %v923, 64
    %v926 = vpop.permute.xlu0 %925
    %v928 = vmul.f32 %v907, %v926
    %v929 = vmul.f32 %v909, %v835
    %931 = vrot.lane.b32.xlu0 %v911, 64
    %v932 = vpop.permute.xlu0 %931
    %v934 = vmul.f32 %v909, %v932
    %936 = vrot.lane.b32.xlu0 %v934, 32
    %v937 = vpop.permute.xlu0 %936
    %v939 = vadd.f32 %v929, %v937
    %v940 = vtanh.pop %v939
    %942 = vrot.lane.b32.xlu0 %v940, 64
    %v943 = vpop.permute.xlu0 %942
    %v945 = vmul.f32 %v909, %v943
    %947 = vrot.lane.b32.xlu0 %v928, 32
    %v948 = vpop.permute.xlu0 %947
    %951 = vrot.lane.b32.xlu0 %v945, 64
    %v952 = vpop.permute.xlu0 %951
    %v954 = vsel %vm328, %v948, %v952
    %v955 = vpack.c.bf16 %v954, %v954
    %v957 = vsel %vm331, %v955, 0
    %959 = vmatprep.subr.bf16.mxu0 %v265
    %960 = vmatpush1.bf16.msra.mxu0 %v264
    %961 = vmatprep.subr.bf16.mxu0 %v267
    %962 = vmatpush1.bf16.msra.mxu0 %v266
    %963 = vmatprep.subr.bf16.mxu0 %v269
    %964 = vmatpush1.bf16.msra.mxu0 %v268
    %965 = vmatprep.subr.bf16.mxu0 %v271
    %966 = vmatpush1.bf16.msra.mxu0 %v270
    %967 = vmatprep.subr.bf16.mxu0 0
    %968 = vmatpush1.bf16.msra.mxu0 0
    %969 = vmatprep.subr.bf16.mxu0 0
    %970 = vmatpush1.bf16.msra.mxu0 0
    %971 = vmatprep.subr.bf16.mxu0 0
    %972 = vmatpush1.bf16.msra.mxu0 0
    %973 = vmatprep.subr.bf16.mxu0 0
    %974 = vmatpush1.bf16.msra.mxu0 0
    %975 = vmatprep.subr.bf16.mxu0 0
    %976 = vmatpush1.bf16.msra.mxu0 0
    %977 = vmatprep.subr.bf16.mxu0 0
    %978 = vmatpush1.bf16.msra.mxu0 0
    %979 = vmatprep.subr.bf16.mxu0 0
    %980 = vmatpush1.bf16.msra.mxu0 0
    %981 = vmatprep.subr.bf16.mxu0 0
    %982 = vmatpush1.bf16.msra.mxu0 0
    %983 = vmatprep.subr.bf16.mxu0 0
    %984 = vmatpush1.bf16.msra.mxu0 0
    %985 = vmatprep.subr.bf16.mxu0 0
    %986 = vmatpush1.bf16.msra.mxu0 0
    %987 = vmatprep.subr.bf16.mxu0 0
    %988 = vmatpush1.bf16.msra.mxu0 0
    %989 = vmatprep.subr.bf16.mxu0 0
    %990 = vmatpush1.bf16.msra.mxu0 0
    %991 = vmatprep.mubr.bf16.mxu0 0
    %992 = vmatmul.mubr.bf16.gmra.mrb[0].mxu0 %v957
    %v993 = vpop.f32.mrb[0].mxu0
    %v994 = vadd.f32 0.0, %v993
    %v995 = vpop.f32.mrb[0].mxu0
    %v996 = vadd.f32 0.0, %v995
    %v997 = vpop.f32.mrb[0].mxu0
    %v998 = vpop.f32.mrb[0].mxu0
    %999 = vdwg.mxu0
    %v1000 = vadd.f32 %v246, %v994
    %v1001 = vadd.f32 %v247, %v996
    %v1002 = vxor.u32 %v1000, 2147483648
    %v1003 = vxor.u32 %v1001, 2147483648
    %v1004 = vmul.f32 %v1002, 1.442695
    %v1005 = vpow.pop %v1004
    %v1006 = vmul.f32 %v1003, 1.442695
    %v1007 = vpow.pop %v1006
    %v1008 = vadd.f32 %v1005, 1.0
    %v1009 = vadd.f32 %v1007, 1.0
    %v1010 = vrcp.pop %v1008
    %v1011 = vmul.f32 1.0, %v1010
    %v1012 = vrcp.pop %v1009
    %v1013 = vmul.f32 1.0, %v1012
    %v1014 = vtanh.pop %v1000
    %v1015 = vtanh.pop %v1001
    %v1016 = vmul.f32 %v1011, %v922
    %1018 = vrot.lane.b32.xlu0 %v1014, 64
    %v1019 = vpop.permute.xlu0 %1018
    %v1021 = vmul.f32 %v1011, %v1019
    %1023 = vrot.lane.b32.xlu0 %v1021, 32
    %v1024 = vpop.permute.xlu0 %1023
    %v1026 = vadd.f32 %v1016, %v1024
    %v1027 = vtanh.pop %v1026
    %1029 = vrot.lane.b32.xlu0 %v1027, 64
    %v1030 = vpop.permute.xlu0 %1029
    %v1032 = vmul.f32 %v1011, %v1030
    %v1033 = vmul.f32 %v1013, %v939
    %1035 = vrot.lane.b32.xlu0 %v1015, 64
    %v1036 = vpop.permute.xlu0 %1035
    %v1038 = vmul.f32 %v1013, %v1036
    %1040 = vrot.lane.b32.xlu0 %v1038, 32
    %v1041 = vpop.permute.xlu0 %1040
    %v1043 = vadd.f32 %v1033, %v1041
    %v1044 = vtanh.pop %v1043
    %1046 = vrot.lane.b32.xlu0 %v1044, 64
    %v1047 = vpop.permute.xlu0 %1046
    %v1049 = vmul.f32 %v1013, %v1047
    %1051 = vrot.lane.b32.xlu0 %v1049, 64
    %v1052 = vpop.permute.xlu0 %1051
    %v1054 = vsel %vm328, %v322, %v1052
    %v1055 = vsel %vm328, %v428, %v952
    %v1056 = vsel %vm328, %v532, %v848
    %v1057 = vsel %vm328, %v636, %v744
    %v1058 = vsel %vm328, %v740, %v640
    %v1059 = vsel %vm328, %v844, %v536
    %v1060 = vsel %vm328, %v948, %v432
    %1062 = vrot.lane.b32.xlu0 %v1032, 32
    %v1063 = vpop.permute.xlu0 %1062
    %v1065 = vsel %vm328, %v1063, %v326
    %v1068 = vunpack.c.l.s4 1966171168
    %v1069 = vunpack.c.0.s8 %v1068
    %v1070 = vlaneseq
    %v1071 = vshrl.u32 %v1070, 7
    %v1072 = vsub.s32 %v1069, %v1071
    %v1073 = vrot.slane %v1054, %v1072
    %v1074 = vcombine.high %v1073, %v1073
    %v1076 = vunpack.c.l.s4 1966171168
    %v1077 = vunpack.c.0.s8 %v1076
    %v1078 = vlaneseq
    %v1079 = vshrl.u32 %v1078, 7
    %v1080 = vsub.s32 %v1077, %v1079
    %v1081 = vrot.slane %v1073, %v1080
    %v1083 = vunpack.c.l.s4 1966171168
    %v1084 = vunpack.c.0.s8 %v1083
    %v1085 = vlaneseq
    %v1086 = vshrl.u32 %v1085, 7
    %v1087 = vsub.s32 %v1084, %v1086
    %v1088 = vrot.slane %v1074, %v1087
    %v1093 = vunpack.c.l.s4 1966171168
    %v1094 = vunpack.c.0.s8 %v1093
    %v1095 = vlaneseq
    %v1096 = vshrl.u32 %v1095, 7
    %v1097 = vsub.s32 %v1094, %v1096
    %v1098 = vrot.slane %v1055, %v1097
    %v1099 = vcombine.high %v1098, %v1098
    %v1101 = vunpack.c.l.s4 1966171168
    %v1102 = vunpack.c.0.s8 %v1101
    %v1103 = vlaneseq
    %v1104 = vshrl.u32 %v1103, 7
    %v1105 = vsub.s32 %v1102, %v1104
    %v1106 = vrot.slane %v1098, %v1105
    %v1108 = vunpack.c.l.s4 1966171168
    %v1109 = vunpack.c.0.s8 %v1108
    %v1110 = vlaneseq
    %v1111 = vshrl.u32 %v1110, 7
    %v1112 = vsub.s32 %v1109, %v1111
    %v1113 = vrot.slane %v1099, %v1112
    %v1116 = vunpack.c.l.s4 1966171168
    %v1117 = vunpack.c.0.s8 %v1116
    %v1118 = vlaneseq
    %v1119 = vshrl.u32 %v1118, 7
    %v1120 = vsub.s32 %v1117, %v1119
    %v1121 = vrot.slane %v1056, %v1120
    %v1122 = vcombine.high %v1121, %v1121
    %v1124 = vunpack.c.l.s4 1966171168
    %v1125 = vunpack.c.0.s8 %v1124
    %v1126 = vlaneseq
    %v1127 = vshrl.u32 %v1126, 7
    %v1128 = vsub.s32 %v1125, %v1127
    %v1129 = vrot.slane %v1121, %v1128
    %v1131 = vunpack.c.l.s4 1966171168
    %v1132 = vunpack.c.0.s8 %v1131
    %v1133 = vlaneseq
    %v1134 = vshrl.u32 %v1133, 7
    %v1135 = vsub.s32 %v1132, %v1134
    %v1136 = vrot.slane %v1122, %v1135
    %v1139 = vunpack.c.l.s4 1966171168
    %v1140 = vunpack.c.0.s8 %v1139
    %v1141 = vlaneseq
    %v1142 = vshrl.u32 %v1141, 7
    %v1143 = vsub.s32 %v1140, %v1142
    %v1144 = vrot.slane %v1057, %v1143
    %v1145 = vcombine.high %v1144, %v1144
    %v1147 = vunpack.c.l.s4 1966171168
    %v1148 = vunpack.c.0.s8 %v1147
    %v1149 = vlaneseq
    %v1150 = vshrl.u32 %v1149, 7
    %v1151 = vsub.s32 %v1148, %v1150
    %v1152 = vrot.slane %v1144, %v1151
    %v1154 = vunpack.c.l.s4 1966171168
    %v1155 = vunpack.c.0.s8 %v1154
    %v1156 = vlaneseq
    %v1157 = vshrl.u32 %v1156, 7
    %v1158 = vsub.s32 %v1155, %v1157
    %v1159 = vrot.slane %v1145, %v1158
    %v1162 = vunpack.c.l.s4 1966171168
    %v1163 = vunpack.c.0.s8 %v1162
    %v1164 = vlaneseq
    %v1165 = vshrl.u32 %v1164, 7
    %v1166 = vsub.s32 %v1163, %v1165
    %v1167 = vrot.slane %v1058, %v1166
    %v1168 = vcombine.high %v1167, %v1167
    %v1170 = vunpack.c.l.s4 1966171168
    %v1171 = vunpack.c.0.s8 %v1170
    %v1172 = vlaneseq
    %v1173 = vshrl.u32 %v1172, 7
    %v1174 = vsub.s32 %v1171, %v1173
    %v1175 = vrot.slane %v1167, %v1174
    %v1177 = vunpack.c.l.s4 1966171168
    %v1178 = vunpack.c.0.s8 %v1177
    %v1179 = vlaneseq
    %v1180 = vshrl.u32 %v1179, 7
    %v1181 = vsub.s32 %v1178, %v1180
    %v1182 = vrot.slane %v1168, %v1181
    %v1185 = vunpack.c.l.s4 1966171168
    %v1186 = vunpack.c.0.s8 %v1185
    %v1187 = vlaneseq
    %v1188 = vshrl.u32 %v1187, 7
    %v1189 = vsub.s32 %v1186, %v1188
    %v1190 = vrot.slane %v1059, %v1189
    %v1191 = vcombine.high %v1190, %v1190
    %v1193 = vunpack.c.l.s4 1966171168
    %v1194 = vunpack.c.0.s8 %v1193
    %v1195 = vlaneseq
    %v1196 = vshrl.u32 %v1195, 7
    %v1197 = vsub.s32 %v1194, %v1196
    %v1198 = vrot.slane %v1190, %v1197
    %v1200 = vunpack.c.l.s4 1966171168
    %v1201 = vunpack.c.0.s8 %v1200
    %v1202 = vlaneseq
    %v1203 = vshrl.u32 %v1202, 7
    %v1204 = vsub.s32 %v1201, %v1203
    %v1205 = vrot.slane %v1191, %v1204
    %v1208 = vunpack.c.l.s4 1966171168
    %v1209 = vunpack.c.0.s8 %v1208
    %v1210 = vlaneseq
    %v1211 = vshrl.u32 %v1210, 7
    %v1212 = vsub.s32 %v1209, %v1211
    %v1213 = vrot.slane %v1060, %v1212
    %v1214 = vcombine.high %v1213, %v1213
    %v1216 = vunpack.c.l.s4 1966171168
    %v1217 = vunpack.c.0.s8 %v1216
    %v1218 = vlaneseq
    %v1219 = vshrl.u32 %v1218, 7
    %v1220 = vsub.s32 %v1217, %v1219
    %v1221 = vrot.slane %v1213, %v1220
    %v1223 = vunpack.c.l.s4 1966171168
    %v1224 = vunpack.c.0.s8 %v1223
    %v1225 = vlaneseq
    %v1226 = vshrl.u32 %v1225, 7
    %v1227 = vsub.s32 %v1224, %v1226
    %v1228 = vrot.slane %v1214, %v1227
    %v1231 = vunpack.c.l.s4 1966171168
    %v1232 = vunpack.c.0.s8 %v1231
    %v1233 = vlaneseq
    %v1234 = vshrl.u32 %v1233, 7
    %v1235 = vsub.s32 %v1232, %v1234
    %v1236 = vrot.slane %v1065, %v1235
    %v1237 = vcombine.high %v1236, %v1236
    %v1239 = vunpack.c.l.s4 1966171168
    %v1240 = vunpack.c.0.s8 %v1239
    %v1241 = vlaneseq
    %v1242 = vshrl.u32 %v1241, 7
    %v1243 = vsub.s32 %v1240, %v1242
    %v1244 = vrot.slane %v1236, %v1243
    %v1246 = vunpack.c.l.s4 1966171168
    %v1247 = vunpack.c.0.s8 %v1246
    %v1248 = vlaneseq
    %v1249 = vshrl.u32 %v1248, 7
    %v1250 = vsub.s32 %v1247, %v1249
    %v1251 = vrot.slane %v1237, %v1250
    %v1252 = vlaneseq
    %v1253 = vshrl.u32 %v1252, 7
    %v1254 = vsub.s32 0, %v1253
    %v1255 = vrot.slane %v1106, %v1254
    %v1256 = vlaneseq
    %v1257 = vshrl.u32 %v1256, 7
    %v1258 = vsub.s32 0, %v1257
    %v1259 = vrot.slane %v1113, %v1258
    %v1262 = vlaneseq
    %v1263 = vshrl.u32 %v1262, 7
    %v1264 = vsub.s32 0, %v1263
    %v1265 = vrot.slane %v1129, %v1264
    %v1266 = vlaneseq
    %v1267 = vshrl.u32 %v1266, 7
    %v1268 = vsub.s32 0, %v1267
    %v1269 = vrot.slane %v1136, %v1268
    %v1272 = vlaneseq
    %v1273 = vshrl.u32 %v1272, 7
    %v1274 = vsub.s32 0, %v1273
    %v1275 = vrot.slane %v1152, %v1274
    %v1276 = vlaneseq
    %v1277 = vshrl.u32 %v1276, 7
    %v1278 = vsub.s32 0, %v1277
    %v1279 = vrot.slane %v1159, %v1278
    %v1282 = vlaneseq
    %v1283 = vshrl.u32 %v1282, 7
    %v1284 = vsub.s32 0, %v1283
    %v1285 = vrot.slane %v1175, %v1284
    %v1286 = vlaneseq
    %v1287 = vshrl.u32 %v1286, 7
    %v1288 = vsub.s32 0, %v1287
    %v1289 = vrot.slane %v1182, %v1288
    %v1292 = vlaneseq
    %v1293 = vshrl.u32 %v1292, 7
    %v1294 = vsub.s32 0, %v1293
    %v1295 = vrot.slane %v1198, %v1294
    %v1296 = vlaneseq
    %v1297 = vshrl.u32 %v1296, 7
    %v1298 = vsub.s32 0, %v1297
    %v1299 = vrot.slane %v1205, %v1298
    %v1302 = vlaneseq
    %v1303 = vshrl.u32 %v1302, 7
    %v1304 = vsub.s32 0, %v1303
    %v1305 = vrot.slane %v1221, %v1304
    %v1306 = vlaneseq
    %v1307 = vshrl.u32 %v1306, 7
    %v1308 = vsub.s32 0, %v1307
    %v1309 = vrot.slane %v1228, %v1308
    %v1312 = vlaneseq
    %v1313 = vshrl.u32 %v1312, 7
    %v1314 = vsub.s32 0, %v1313
    %v1315 = vrot.slane %v1244, %v1314
    %v1316 = vlaneseq
    %v1317 = vshrl.u32 %v1316, 7
    %v1318 = vsub.s32 0, %v1317
    %v1319 = vrot.slane %v1251, %v1318
    %v1322 = vsel %vm171, %v1081, %v1255
    %v1323 = vsel %vm171, %v1088, %v1259
    %v1324 = vsel %vm66, %v1322, %v1265
    %v1325 = vsel %vm66, %v1323, %v1269
    %vm1326 = vcmask 1042432
    %v1327 = vsel %vm1326, %v1324, %v1275
    %v1328 = vsel %vm1326, %v1325, %v1279
    %vm1329 = vcmask 1043456
    %v1330 = vsel %vm1329, %v1327, %v1285
    %v1331 = vsel %vm1329, %v1328, %v1289
    %vm1332 = vcmask 1044480
    %v1333 = vsel %vm1332, %v1330, %v1295
    %v1334 = vsel %vm1332, %v1331, %v1299
    %vm1335 = vcmask 1045504
    %v1336 = vsel %vm1335, %v1333, %v1305
    %v1337 = vsel %vm1335, %v1334, %v1309
    %vm1338 = vcmask 1046528
    %v1339 = vsel %vm1338, %v1336, %v1315
    %v1340 = vsel %vm1338, %v1337, %v1319
    %v1341 = vmul.f32 %v1339, 0.125
    %v1342 = vmul.f32 %v1340, 0.125
    %v1344 = vsel %vm331, %v1341, 0
    %v1347 = vsel %vm331, %v1339, 0
    %1349 = vmatprep.subr.mxu0 0.0
    %1350 = vmatpush1.xpose.msra.mxu0 %v1347
    %1351 = vmatprep.subr.mxu0 0.0
    %1352 = vmatpush1.xpose.msra.mxu0 0.0
    %1353 = vmatprep.subr.mxu0 0.0
    %1354 = vmatpush1.xpose.msra.mxu0 0.0
    %1355 = vmatprep.subr.mxu0 0.0
    %1356 = vmatpush1.xpose.msra.mxu0 0.0
    %1357 = vmatprep.subr.mxu0 0.0
    %1358 = vmatpush1.xpose.msra.mxu0 0.0
    %1359 = vmatprep.subr.mxu0 0.0
    %1360 = vmatpush1.xpose.msra.mxu0 0.0
    %1361 = vmatprep.subr.mxu0 0.0
    %1362 = vmatpush1.xpose.msra.mxu0 0.0
    %1363 = vmatprep.subr.mxu0 0.0
    %1364 = vmatpush1.xpose.msra.mxu0 0.0
    %1365 = vmatprep.subr.mxu0 0.0
    %1366 = vmatpush1.xpose.msra.mxu0 0.0
    %1367 = vmatprep.subr.mxu0 0.0
    %1368 = vmatpush1.xpose.msra.mxu0 0.0
    %1369 = vmatprep.subr.mxu0 0.0
    %1370 = vmatpush1.xpose.msra.mxu0 0.0
    %1371 = vmatprep.subr.mxu0 0.0
    %1372 = vmatpush1.xpose.msra.mxu0 0.0
    %1373 = vmatprep.subr.mxu0 0.0
    %1374 = vmatpush1.xpose.msra.mxu0 0.0
    %1375 = vmatprep.subr.mxu0 0.0
    %1376 = vmatpush1.xpose.msra.mxu0 0.0
    %1377 = vmatprep.subr.mxu0 0.0
    %1378 = vmatpush1.xpose.msra.mxu0 0.0
    %1379 = vmatprep.subr.mxu0 0.0
    %1380 = vmatpush1.xpose.msra.mxu0 0.0
    %1381 = vmatprep.subr.mxu0 0.0
    %1382 = vmatpush1.xpose.msra.mxu0 0.0
    %1383 = vmatprep.subr.mxu0 0.0
    %1384 = vmatpush1.xpose.msra.mxu0 0.0
    %1385 = vmatprep.subr.mxu0 0.0
    %1386 = vmatpush1.xpose.msra.mxu0 0.0
    %1387 = vmatprep.subr.mxu0 0.0
    %1388 = vmatpush1.xpose.msra.mxu0 0.0
    %1389 = vmatprep.subr.mxu0 0.0
    %1390 = vmatpush1.xpose.msra.mxu0 0.0
    %1391 = vmatprep.subr.mxu0 0.0
    %1392 = vmatpush1.xpose.msra.mxu0 0.0
    %1393 = vmatprep.subr.mxu0 0.0
    %1394 = vmatpush1.xpose.msra.mxu0 0.0
    %1395 = vmatprep.subr.mxu0 0.0
    %1396 = vmatpush1.xpose.msra.mxu0 0.0
    %1397 = vmatprep.subr.mxu0 0.0
    %1398 = vmatpush1.xpose.msra.mxu0 0.0
    %1399 = vmatprep.subr.mxu0 0.0
    %1400 = vmatpush1.xpose.msra.mxu0 0.0
    %1401 = vmatprep.subr.mxu0 0.0
    %1402 = vmatpush1.xpose.msra.mxu0 0.0
    %1403 = vmatprep.subr.mxu0 0.0
    %1404 = vmatpush1.xpose.msra.mxu0 0.0
    %1405 = vmatprep.subr.mxu0 0.0
    %1406 = vmatpush1.xpose.msra.mxu0 0.0
    %1407 = vmatprep.subr.mxu0 0.0
    %1408 = vmatpush1.xpose.msra.mxu0 0.0
    %1409 = vmatprep.subr.mxu0 0.0
    %1410 = vmatpush1.xpose.msra.mxu0 0.0
    %1411 = vmatprep.subr.mxu0 0.0
    %1412 = vmatpush1.xpose.msra.mxu0 0.0
    %1413 = vmatprep.mubr.f32.mxu0 0.0
    %1414 = vmatmul.mubr.f32.gmra.mrb[0].mxu0 %v1344
    %v1415 = vpop.f32.mrb[0].mxu0
    %v1416 = vadd.f32 0.0, %v1415
    %v1417 = vpop.f32.mrb[0].mxu0
    %1418 = vdwg.mxu0
    %v1420 = vsel %vm331, %v1342, 0
    %v1423 = vsel %vm331, %v1340, 0
    %1425 = vmatprep.subr.mxu0 0.0
    %1426 = vmatpush1.xpose.msra.mxu0 %v1423
    %1427 = vmatprep.subr.mxu0 0.0
    %1428 = vmatpush1.xpose.msra.mxu0 0.0
    %1429 = vmatprep.subr.mxu0 0.0
    %1430 = vmatpush1.xpose.msra.mxu0 0.0
    %1431 = vmatprep.subr.mxu0 0.0
    %1432 = vmatpush1.xpose.msra.mxu0 0.0
    %1433 = vmatprep.subr.mxu0 0.0
    %1434 = vmatpush1.xpose.msra.mxu0 0.0
    %1435 = vmatprep.subr.mxu0 0.0
    %1436 = vmatpush1.xpose.msra.mxu0 0.0
    %1437 = vmatprep.subr.mxu0 0.0
    %1438 = vmatpush1.xpose.msra.mxu0 0.0
    %1439 = vmatprep.subr.mxu0 0.0
    %1440 = vmatpush1.xpose.msra.mxu0 0.0
    %1441 = vmatprep.subr.mxu0 0.0
    %1442 = vmatpush1.xpose.msra.mxu0 0.0
    %1443 = vmatprep.subr.mxu0 0.0
    %1444 = vmatpush1.xpose.msra.mxu0 0.0
    %1445 = vmatprep.subr.mxu0 0.0
    %1446 = vmatpush1.xpose.msra.mxu0 0.0
    %1447 = vmatprep.subr.mxu0 0.0
    %1448 = vmatpush1.xpose.msra.mxu0 0.0
    %1449 = vmatprep.subr.mxu0 0.0
    %1450 = vmatpush1.xpose.msra.mxu0 0.0
    %1451 = vmatprep.subr.mxu0 0.0
    %1452 = vmatpush1.xpose.msra.mxu0 0.0
    %1453 = vmatprep.subr.mxu0 0.0
    %1454 = vmatpush1.xpose.msra.mxu0 0.0
    %1455 = vmatprep.subr.mxu0 0.0
    %1456 = vmatpush1.xpose.msra.mxu0 0.0
    %1457 = vmatprep.subr.mxu0 0.0
    %1458 = vmatpush1.xpose.msra.mxu0 0.0
    %1459 = vmatprep.subr.mxu0 0.0
    %1460 = vmatpush1.xpose.msra.mxu0 0.0
    %1461 = vmatprep.subr.mxu0 0.0
    %1462 = vmatpush1.xpose.msra.mxu0 0.0
    %1463 = vmatprep.subr.mxu0 0.0
    %1464 = vmatpush1.xpose.msra.mxu0 0.0
    %1465 = vmatprep.subr.mxu0 0.0
    %1466 = vmatpush1.xpose.msra.mxu0 0.0
    %1467 = vmatprep.subr.mxu0 0.0
    %1468 = vmatpush1.xpose.msra.mxu0 0.0
    %1469 = vmatprep.subr.mxu0 0.0
    %1470 = vmatpush1.xpose.msra.mxu0 0.0
    %1471 = vmatprep.subr.mxu0 0.0
    %1472 = vmatpush1.xpose.msra.mxu0 0.0
    %1473 = vmatprep.subr.mxu0 0.0
    %1474 = vmatpush1.xpose.msra.mxu0 0.0
    %1475 = vmatprep.subr.mxu0 0.0
    %1476 = vmatpush1.xpose.msra.mxu0 0.0
    %1477 = vmatprep.subr.mxu0 0.0
    %1478 = vmatpush1.xpose.msra.mxu0 0.0
    %1479 = vmatprep.subr.mxu0 0.0
    %1480 = vmatpush1.xpose.msra.mxu0 0.0
    %1481 = vmatprep.subr.mxu0 0.0
    %1482 = vmatpush1.xpose.msra.mxu0 0.0
    %1483 = vmatprep.subr.mxu0 0.0
    %1484 = vmatpush1.xpose.msra.mxu0 0.0
    %1485 = vmatprep.subr.mxu0 0.0
    %1486 = vmatpush1.xpose.msra.mxu0 0.0
    %1487 = vmatprep.subr.mxu0 0.0
    %1488 = vmatpush1.xpose.msra.mxu0 0.0
    %1489 = vmatprep.mubr.f32.mxu0 0.0
    %1490 = vmatmul.mubr.f32.gmra.mrb[0].mxu0 %v1420
    %v1491 = vpop.f32.mrb[0].mxu0
    %v1492 = vadd.f32 0.0, %v1491
    %v1493 = vpop.f32.mrb[0].mxu0
    %1494 = vdwg.mxu0
    %vm1495 = vcmask 64512
    %v1496 = vsel %vm1495, %v1416, -inf
    %1497 = vmax.xlane.f32.xlu0 %v1496
    %v1498 = vpop.xlane.xlu0 %1497
    %v1499 = vsel %vm1495, %v1492, -inf
    %1500 = vmax.xlane.f32.xlu0 %v1499
    %v1501 = vpop.xlane.xlu0 %1500
    %v1502 = vsub.f32 %v1416, %v1498
    %v1503 = vsub.f32 %v1492, %v1501
    %v1504 = vmul.f32 %v1502, 1.442695
    %v1505 = vpow.pop %v1504
    %v1506 = vmul.f32 %v1503, 1.442695
    %v1507 = vpow.pop %v1506
    %v1508 = vsel %vm1495, %v1505, 0.0
    %1509 = vadd.xlane.f32.xlu0 %v1508
    %v1510 = vpop.xlane.xlu0 %1509
    %v1511 = vsel %vm1495, %v1507, 0.0
    %1512 = vadd.xlane.f32.xlu0 %v1511
    %v1513 = vpop.xlane.xlu0 %1512
    %v1514 = vrcp.pop %v1510
    %v1515 = vmul.f32 %v1505, %v1514
    %v1516 = vrcp.pop %v1513
    %v1517 = vmul.f32 %v1507, %v1516
    %1518 = vst.msk [vmem:[#allocation6] sm:$0xff] %vm1495, %v1515
    %1519 = vst.msk [vmem:[#allocation6 + $0x8] sm:$0xff] %vm1495, %v1517
    %v1521 = vrot.slane %v1515, 7
    %v1522 = vsel %vm1495, %v1521, 0
    %1524 = vmatprep.subr.mxu0 0.0
    %1525 = vmatpush1.msra.mxu0 %v1339
    %1526 = vmatprep.subr.mxu0 0.0
    %1527 = vmatpush1.msra.mxu0 0.0
    %1528 = vmatprep.subr.mxu0 0.0
    %1529 = vmatpush1.msra.mxu0 0.0
    %1530 = vmatprep.subr.mxu0 0.0
    %1531 = vmatpush1.msra.mxu0 0.0
    %1532 = vmatprep.subr.mxu0 0.0
    %1533 = vmatpush1.msra.mxu0 0.0
    %1534 = vmatprep.subr.mxu0 0.0
    %1535 = vmatpush1.msra.mxu0 0.0
    %1536 = vmatprep.subr.mxu0 0.0
    %1537 = vmatpush1.msra.mxu0 0.0
    %1538 = vmatprep.subr.mxu0 0.0
    %1539 = vmatpush1.msra.mxu0 0.0
    %1540 = vmatprep.subr.mxu0 0.0
    %1541 = vmatpush1.msra.mxu0 0.0
    %1542 = vmatprep.subr.mxu0 0.0
    %1543 = vmatpush1.msra.mxu0 0.0
    %1544 = vmatprep.subr.mxu0 0.0
    %1545 = vmatpush1.msra.mxu0 0.0
    %1546 = vmatprep.subr.mxu0 0.0
    %1547 = vmatpush1.msra.mxu0 0.0
    %1548 = vmatprep.subr.mxu0 0.0
    %1549 = vmatpush1.msra.mxu0 0.0
    %1550 = vmatprep.subr.mxu0 0.0
    %1551 = vmatpush1.msra.mxu0 0.0
    %1552 = vmatprep.subr.mxu0 0.0
    %1553 = vmatpush1.msra.mxu0 0.0
    %1554 = vmatprep.subr.mxu0 0.0
    %1555 = vmatpush1.msra.mxu0 0.0
    %1556 = vmatprep.subr.mxu0 0.0
    %1557 = vmatpush1.msra.mxu0 0.0
    %1558 = vmatprep.subr.mxu0 0.0
    %1559 = vmatpush1.msra.mxu0 0.0
    %1560 = vmatprep.subr.mxu0 0.0
    %1561 = vmatpush1.msra.mxu0 0.0
    %1562 = vmatprep.subr.mxu0 0.0
    %1563 = vmatpush1.msra.mxu0 0.0
    %1564 = vmatprep.subr.mxu0 0.0
    %1565 = vmatpush1.msra.mxu0 0.0
    %1566 = vmatprep.subr.mxu0 0.0
    %1567 = vmatpush1.msra.mxu0 0.0
    %1568 = vmatprep.subr.mxu0 0.0
    %1569 = vmatpush1.msra.mxu0 0.0
    %1570 = vmatprep.subr.mxu0 0.0
    %1571 = vmatpush1.msra.mxu0 0.0
    %1572 = vmatprep.subr.mxu0 0.0
    %1573 = vmatpush1.msra.mxu0 0.0
    %1574 = vmatprep.subr.mxu0 0.0
    %1575 = vmatpush1.msra.mxu0 0.0
    %1576 = vmatprep.subr.mxu0 0.0
    %1577 = vmatpush1.msra.mxu0 0.0
    %1578 = vmatprep.subr.mxu0 0.0
    %1579 = vmatpush1.msra.mxu0 0.0
    %1580 = vmatprep.subr.mxu0 0.0
    %1581 = vmatpush1.msra.mxu0 0.0
    %1582 = vmatprep.subr.mxu0 0.0
    %1583 = vmatpush1.msra.mxu0 0.0
    %1584 = vmatprep.subr.mxu0 0.0
    %1585 = vmatpush1.msra.mxu0 0.0
    %1586 = vmatprep.subr.mxu0 0.0
    %1587 = vmatpush1.msra.mxu0 0.0
    %1588 = vmatprep.mubr.f32.mxu0 0.0
    %1589 = vmatmul.mubr.f32.gmra.mrb[0].mxu0 %v1522
    %v1590 = vpop.f32.mrb[0].mxu0
    %v1591 = vadd.f32 0.0, %v1590
    %v1592 = vpop.f32.mrb[0].mxu0
    %1593 = vdwg.mxu0
    %v1595 = vrot.slane %v1517, 7
    %v1596 = vsel %vm1495, %v1595, 0
    %1598 = vmatprep.subr.mxu0 0.0
    %1599 = vmatpush1.msra.mxu0 %v1340
    %1600 = vmatprep.subr.mxu0 0.0
    %1601 = vmatpush1.msra.mxu0 0.0
    %1602 = vmatprep.subr.mxu0 0.0
    %1603 = vmatpush1.msra.mxu0 0.0
    %1604 = vmatprep.subr.mxu0 0.0
    %1605 = vmatpush1.msra.mxu0 0.0
    %1606 = vmatprep.subr.mxu0 0.0
    %1607 = vmatpush1.msra.mxu0 0.0
    %1608 = vmatprep.subr.mxu0 0.0
    %1609 = vmatpush1.msra.mxu0 0.0
    %1610 = vmatprep.subr.mxu0 0.0
    %1611 = vmatpush1.msra.mxu0 0.0
    %1612 = vmatprep.subr.mxu0 0.0
    %1613 = vmatpush1.msra.mxu0 0.0
    %1614 = vmatprep.subr.mxu0 0.0
    %1615 = vmatpush1.msra.mxu0 0.0
    %1616 = vmatprep.subr.mxu0 0.0
    %1617 = vmatpush1.msra.mxu0 0.0
    %1618 = vmatprep.subr.mxu0 0.0
    %1619 = vmatpush1.msra.mxu0 0.0
    %1620 = vmatprep.subr.mxu0 0.0
    %1621 = vmatpush1.msra.mxu0 0.0
    %1622 = vmatprep.subr.mxu0 0.0
    %1623 = vmatpush1.msra.mxu0 0.0
    %1624 = vmatprep.subr.mxu0 0.0
    %1625 = vmatpush1.msra.mxu0 0.0
    %1626 = vmatprep.subr.mxu0 0.0
    %1627 = vmatpush1.msra.mxu0 0.0
    %1628 = vmatprep.subr.mxu0 0.0
    %1629 = vmatpush1.msra.mxu0 0.0
    %1630 = vmatprep.subr.mxu0 0.0
    %1631 = vmatpush1.msra.mxu0 0.0
    %1632 = vmatprep.subr.mxu0 0.0
    %1633 = vmatpush1.msra.mxu0 0.0
    %1634 = vmatprep.subr.mxu0 0.0
    %1635 = vmatpush1.msra.mxu0 0.0
    %1636 = vmatprep.subr.mxu0 0.0
    %1637 = vmatpush1.msra.mxu0 0.0
    %1638 = vmatprep.subr.mxu0 0.0
    %1639 = vmatpush1.msra.mxu0 0.0
    %1640 = vmatprep.subr.mxu0 0.0
    %1641 = vmatpush1.msra.mxu0 0.0
    %1642 = vmatprep.subr.mxu0 0.0
    %1643 = vmatpush1.msra.mxu0 0.0
    %1644 = vmatprep.subr.mxu0 0.0
    %1645 = vmatpush1.msra.mxu0 0.0
    %1646 = vmatprep.subr.mxu0 0.0
    %1647 = vmatpush1.msra.mxu0 0.0
    %1648 = vmatprep.subr.mxu0 0.0
    %1649 = vmatpush1.msra.mxu0 0.0
    %1650 = vmatprep.subr.mxu0 0.0
    %1651 = vmatpush1.msra.mxu0 0.0
    %1652 = vmatprep.subr.mxu0 0.0
    %1653 = vmatpush1.msra.mxu0 0.0
    %1654 = vmatprep.subr.mxu0 0.0
    %1655 = vmatpush1.msra.mxu0 0.0
    %1656 = vmatprep.subr.mxu0 0.0
    %1657 = vmatpush1.msra.mxu0 0.0
    %1658 = vmatprep.subr.mxu0 0.0
    %1659 = vmatpush1.msra.mxu0 0.0
    %1660 = vmatprep.subr.mxu0 0.0
    %1661 = vmatpush1.msra.mxu0 0.0
    %1662 = vmatprep.mubr.f32.mxu0 0.0
    %1663 = vmatmul.mubr.f32.gmra.mrb[0].mxu0 %v1596
    %v1664 = vpop.f32.mrb[0].mxu0
    %v1665 = vadd.f32 0.0, %v1664
    %v1666 = vpop.f32.mrb[0].mxu0
    %1667 = vdwg.mxu0
    %v1668 = vld [vmem:[%s4] sm:$0xff]
    %v1669 = vld [vmem:[%s4 + $0x8] sm:$0xff]
    %v1670 = vld [vmem:[%s4 + $0x10] sm:$0xff]
    %v1671 = vld [vmem:[%s4 + $0x18] sm:$0xff]
    %v1672 = vld [vmem:[%s4 + $0x20] sm:$0xff]
    %v1673 = vld [vmem:[%s4 + $0x28] sm:$0xff]
    %v1674 = vld [vmem:[%s4 + $0x30] sm:$0xff]
    %v1675 = vld [vmem:[%s4 + $0x38] sm:$0xff]
    %v1676 = vld [vmem:[%s5] sm:$0x1]
    %v1678 = vlaneseq
    %v1679 = vshrl.u32 %v1678, 7
    %v1680 = vsub.s32 0, %v1679
    %v1681 = vrot.slane %v1676, %v1680
    %v1685 = vrot.slane %v1665, 7
    %vm1686 = vcmask 1041409
    %v1687 = vsel %vm1686, %v1685, %v1591
    %v1688 = vsel %vm331, %v1687, 0
    %1690 = vmatprep.subr.mxu0 0.0
    %1691 = vmatpush1.msra.mxu0 %v1668
    %1692 = vmatprep.subr.mxu0 0.0
    %1693 = vmatpush1.msra.mxu0 %v1669
    %1694 = vmatprep.subr.mxu0 0.0
    %1695 = vmatpush1.msra.mxu0 %v1670
    %1696 = vmatprep.subr.mxu0 0.0
    %1697 = vmatpush1.msra.mxu0 %v1671
    %1698 = vmatprep.subr.mxu0 0.0
    %1699 = vmatpush1.msra.mxu0 %v1672
    %1700 = vmatprep.subr.mxu0 0.0
    %1701 = vmatpush1.msra.mxu0 %v1673
    %1702 = vmatprep.subr.mxu0 0.0
    %1703 = vmatpush1.msra.mxu0 %v1674
    %1704 = vmatprep.subr.mxu0 0.0
    %1705 = vmatpush1.msra.mxu0 %v1675
    %1706 = vmatprep.subr.mxu0 0.0
    %1707 = vmatpush1.msra.mxu0 0.0
    %1708 = vmatprep.subr.mxu0 0.0
    %1709 = vmatpush1.msra.mxu0 0.0
    %1710 = vmatprep.subr.mxu0 0.0
    %1711 = vmatpush1.msra.mxu0 0.0
    %1712 = vmatprep.subr.mxu0 0.0
    %1713 = vmatpush1.msra.mxu0 0.0
    %1714 = vmatprep.subr.mxu0 0.0
    %1715 = vmatpush1.msra.mxu0 0.0
    %1716 = vmatprep.subr.mxu0 0.0
    %1717 = vmatpush1.msra.mxu0 0.0
    %1718 = vmatprep.subr.mxu0 0.0
    %1719 = vmatpush1.msra.mxu0 0.0
    %1720 = vmatprep.subr.mxu0 0.0
    %1721 = vmatpush1.msra.mxu0 0.0
    %1722 = vmatprep.subr.mxu0 0.0
    %1723 = vmatpush1.msra.mxu0 0.0
    %1724 = vmatprep.subr.mxu0 0.0
    %1725 = vmatpush1.msra.mxu0 0.0
    %1726 = vmatprep.subr.mxu0 0.0
    %1727 = vmatpush1.msra.mxu0 0.0
    %1728 = vmatprep.subr.mxu0 0.0
    %1729 = vmatpush1.msra.mxu0 0.0
    %1730 = vmatprep.subr.mxu0 0.0
    %1731 = vmatpush1.msra.mxu0 0.0
    %1732 = vmatprep.subr.mxu0 0.0
    %1733 = vmatpush1.msra.mxu0 0.0
    %1734 = vmatprep.subr.mxu0 0.0
    %1735 = vmatpush1.msra.mxu0 0.0
    %1736 = vmatprep.subr.mxu0 0.0
    %1737 = vmatpush1.msra.mxu0 0.0
    %1738 = vmatprep.subr.mxu0 0.0
    %1739 = vmatpush1.msra.mxu0 0.0
    %1740 = vmatprep.subr.mxu0 0.0
    %1741 = vmatpush1.msra.mxu0 0.0
    %1742 = vmatprep.subr.mxu0 0.0
    %1743 = vmatpush1.msra.mxu0 0.0
    %1744 = vmatprep.subr.mxu0 0.0
    %1745 = vmatpush1.msra.mxu0 0.0
    %1746 = vmatprep.subr.mxu0 0.0
    %1747 = vmatpush1.msra.mxu0 0.0
    %1748 = vmatprep.subr.mxu0 0.0
    %1749 = vmatpush1.msra.mxu0 0.0
    %1750 = vmatprep.subr.mxu0 0.0
    %1751 = vmatpush1.msra.mxu0 0.0
    %1752 = vmatprep.subr.mxu0 0.0
    %1753 = vmatpush1.msra.mxu0 0.0
    %1754 = vmatprep.mubr.f32.mxu0 0.0
    %1755 = vmatmul.mubr.f32.gmra.mrb[0].mxu0 %v1688
    %v1756 = vpop.f32.mrb[0].mxu0
    %v1757 = vadd.f32 %v1681, %v1756
    %v1758 = vpop.f32.mrb[0].mxu0
    %1759 = vdwg.mxu0
    %vm1760 = vcmask 41984
    %1761 = vst.msk [vmem:[#allocation5] sm:$0x3] %vm1760, %v1757
    // Predicated region
    $region30: #{tpu_custom_call.1} parent=1 // pred_check
      _
    $region31: #{tpu_custom_call.1} parent=1 // pred_check_branch
      %1763 = sbr.rel (0) target = $region33
    $region32: #{tpu_custom_call.1} parent=1 // pred_region
      %s1765 = ssub.s32 32, 32
      %1766 = vsyncadd [#allocation4], %s1765
      %s1768 = sshll.u32 [#allocation5], 4
      %s1769 = int_to_ptr.vmem [resolvable:$true] %s1768
      %1771 = dma.vmem_to_hbm [thread:$0]  %s1769, 32, %s6, [#allocation4]
    $region33: #{tpu_custom_call.1} parent=1 // pred_fallthru
      _
    // Predicated region
    $region34: #{tpu_custom_call.1} parent=1 // pred_check
      _
    $region35: #{tpu_custom_call.1} parent=1 // pred_check_branch
      %1773 = sbr.rel (0) target = $region37
    $region36: #{tpu_custom_call.1} parent=1 // pred_region
      %s1775 = ssub.s32 256, 256
      %1776 = vsyncadd [#allocation7], %s1775
      %s1777 = sshll.u32 [#allocation6], 4
      %s1778 = int_to_ptr.vmem [resolvable:$true] %s1777
      %1783 = dma.vmem_to_hbm [thread:$0]  %s1778, 256, %s7, [#allocation7], 128, 128, 8
    $region37: #{tpu_custom_call.1} parent=1 // pred_fallthru
      _
    // Predicated region
    $region38: #{tpu_custom_call.1} parent=1 // pred_check
      _
    $region39: #{tpu_custom_call.1} parent=1 // pred_check_branch
      %1785 = sbr.rel (0) target = $region41
    $region40: #{tpu_custom_call.1} parent=1 // pred_region
      %1786 = dma.done [#allocation4], 32
    $region41: #{tpu_custom_call.1} parent=1 // pred_fallthru
      _
    // Predicated region
    $region42: #{tpu_custom_call.1} parent=1 // pred_check
      _
    $region43: #{tpu_custom_call.1} parent=1 // pred_check_branch
      %1788 = sbr.rel (0) target = $region45
    $region44: #{tpu_custom_call.1} parent=1 // pred_region
      %1789 = dma.done [#allocation7], 256
    $region45: #{tpu_custom_call.1} parent=1 // pred_fallthru
      _
    %1790 = vsyncpa [#allocation3], 1
    %1791 = vsyncpa [#allocation4], 1
    %1792 = vsyncpa [#allocation7], 1

</llo_original>
